<compile_context>
chip_gen: v7x
topology: tpu7x:2x2x1
jax: 0.10.0
libtpu: 0.0.40
codegen_flags: <defaults>
</compile_context>

<pallas_src>
import functools

import numpy as np
import jax
import jax.numpy as jnp
from jax.experimental import pallas as pl
from jax.experimental.pallas import tpu as pltpu


def masked_attention_kernel(q_ref, k_ref, v_ref, mask_ref,
                            wqt_ref, bq_ref, wkt_ref, bk_ref, wvt_ref, bv_ref,
                            o_ref, *, binary_mask):
    Bt, S, D = o_ref.shape

    # Flat (Bt*S, D) row slabs: one MXU matmul per projection per grid step.
    q = q_ref[...]          # (Bt*S, D) bf16
    k = k_ref[...]
    v = v_ref[...]

    # Weights pre-transposed host-side; 1/sqrt(d_model) already folded into
    # wqt/bq.  f32 accumulation on the MXU.
    Q = jnp.dot(q, wqt_ref[...], preferred_element_type=jnp.float32) + bq_ref[...]
    K = jnp.dot(k, wkt_ref[...], preferred_element_type=jnp.float32) + bk_ref[...]
    V = jnp.dot(v, wvt_ref[...], preferred_element_type=jnp.float32) + bv_ref[...]

    # Reshape while still f32 (8-sublane tiles -> the batch split lands on
    # tile boundaries when S % 8 == 0), then cast MXU operands to bf16.
    Qb = Q.reshape(Bt, S, D).astype(jnp.bfloat16)
    Kb = K.reshape(Bt, S, D).astype(jnp.bfloat16)
    Vb = V.reshape(Bt, S, D).astype(jnp.bfloat16)

    # scores[b, q, k] = sum_d Q[b,q,d] * K[b,k,d] -- one batched MXU stream,
    # no in-kernel transposes (contract last dims).
    s = jnp.einsum('bqd,bkd->bqk', Qb, Kb,
                   preferred_element_type=jnp.float32)        # (Bt, S, S) f32

    if binary_mask:
        # int8 keep-mask (1 = attend, 0 = masked); expand to additive form.
        keep = mask_ref[...].astype(jnp.float32) != 0.0
        s = jnp.where(keep, s, jnp.float32(-1e30))
    else:
        s = s + mask_ref[...].astype(jnp.float32)             # additive mask

    # Numerically stable softmax, kept in f32 (v5e has no bf16 VPU/EUP).
    s = s - jnp.max(s, axis=-1, keepdims=True)
    p = jnp.exp(s)
    attn = p * pl.reciprocal(jnp.sum(p, axis=-1, keepdims=True), approx=True)

    out = jnp.einsum('bqk,bkd->bqd', attn.astype(jnp.bfloat16), Vb,
                     preferred_element_type=jnp.float32)      # (Bt, S, D) f32

    # Single lane-dense store for the whole block.
    o_ref[...] = out.astype(o_ref.dtype)


def _pick_block_b(B, S):
    """~256-row projection slabs (MXU fill), but keep nb = B // block_b >= 2
    so BlockSpec pipelining and v7x's second TensorCore have work."""
    max_bb = max(1, B // 2)
    target = max(1, 256 // max(S, 1))
    best = 1
    for cand in range(1, min(max_bb, target) + 1):
        if B % cand == 0:
            best = cand
    return best


def _as_keep_mask(mask):
    """Return an int8 keep-mask if `mask` is a concrete {0, <=-1e4}-style
    additive mask, else None (fall back to the float additive path)."""
    try:
        m = np.asarray(jax.device_get(mask))
    except Exception:
        return None            # traced / abstract: keep the float path
    if np.all((m == 0.0) | (m <= -1e4)):
        return jnp.asarray((m == 0.0).astype(np.int8))
    return None


def masked_attention(query, key, value, mask, wq, bq, wk, bk, wv, bv,
                     *, block_b=None, out_dtype=None):
    B, S, D = query.shape
    assert mask.shape == (B, S, S)
    out_dtype = query.dtype if out_dtype is None else out_dtype

    if block_b is None:
        block_b = _pick_block_b(B, S)
    assert B % block_b == 0, (B, block_b)
    nb = B // block_b

    scale = 1.0 / np.sqrt(np.float32(D))

    # bf16 MXU operands; flatten batch rows for the projections.
    q2 = query.reshape(B * S, D).astype(jnp.bfloat16)
    k2 = key.reshape(B * S, D).astype(jnp.bfloat16)
    v2 = value.reshape(B * S, D).astype(jnp.bfloat16)

    keep_mask = _as_keep_mask(mask)
    binary_mask = keep_mask is not None
    mask_in = keep_mask if binary_mask else mask.astype(jnp.float32)

    # Pre-transpose weights once on the host; fold 1/sqrt(d) into Wq/bq.
    wqt = (wq.T * scale).astype(jnp.bfloat16)
    wkt = wk.T.astype(jnp.bfloat16)
    wvt = wv.T.astype(jnp.bfloat16)
    bq2 = (bq * scale).reshape(1, D).astype(jnp.float32)
    bk2 = bk.reshape(1, D).astype(jnp.float32)
    bv2 = bv.reshape(1, D).astype(jnp.float32)

    # Per-step VMEM estimate -> explicit vmem_limit_bytes (v5e default scoped
    # VMEM is only 16 MiB; capped at v7x's 64 MiB physical VMEM).
    rows = block_b * S
    mask_bytes = 1 if binary_mask else 4
    step_bytes = (
        3 * rows * D * 2 * 2                              # q/k/v bf16, 2-buffered
        + block_b * S * S * mask_bytes * 2                # mask, 2-buffered
        + rows * D * jnp.dtype(out_dtype).itemsize * 2    # output, 2-buffered
        + 3 * (D * D * 2 + D * 4)                         # weights + biases
        + 3 * rows * D * 4                                # Q/K/V f32 intermediates
        + 3 * block_b * S * S * 4                         # scores / probs f32
    )
    vmem_limit = int(min(64 * 1024 * 1024,
                         max(32 * 1024 * 1024, 3 * step_bytes)))

    row_spec = pl.BlockSpec((block_b * S, D), lambda i: (i, 0))
    mask_spec = pl.BlockSpec((block_b, S, S), lambda i: (i, 0, 0))
    out_spec = pl.BlockSpec((block_b, S, D), lambda i: (i, 0, 0))

    kernel = functools.partial(masked_attention_kernel, binary_mask=binary_mask)

    def build(single_buffer_weights):
        if single_buffer_weights:
            # Constant-index weights/biases never change across grid steps:
            # no double buffering needed (VMEM headroom on v7x).
            w_spec = pl.BlockSpec((D, D), lambda i: (0, 0),
                                  pipeline_mode=pl.Buffered(1))
            b_spec = pl.BlockSpec((1, D), lambda i: (0, 0),
                                  pipeline_mode=pl.Buffered(1))
        else:
            w_spec = pl.BlockSpec((D, D), lambda i: (0, 0))
            b_spec = pl.BlockSpec((1, D), lambda i: (0, 0))
        return pl.pallas_call(
            kernel,
            out_shape=jax.ShapeDtypeStruct((B, S, D), out_dtype),
            grid_spec=pltpu.PrefetchScalarGridSpec(
                num_scalar_prefetch=0,
                grid=(nb,),
                in_specs=[row_spec, row_spec, row_spec, mask_spec,
                          w_spec, b_spec, w_spec, b_spec, w_spec, b_spec],
                out_specs=out_spec,
            ),
            compiler_params=pltpu.CompilerParams(
                dimension_semantics=("parallel",),
                vmem_limit_bytes=vmem_limit),
        )

    args = (q2, k2, v2, mask_in, wqt, bq2, wkt, bk2, wvt, bv2)
    try:
        out = build(single_buffer_weights=True)(*args)
        return jax.block_until_ready(out)
    except Exception:
        # Fallback if Buffered(1) pipeline_mode is unsupported on this JAX.
        out = build(single_buffer_weights=False)(*args)
        return jax.block_until_ready(out)


def _reference(query, key, value, mask, wq, bq, wk, bk, wv, bv):
    Q = query @ wq.T + bq
    K = key @ wk.T + bk
    V = value @ wv.T + bv
    scores = (Q @ jnp.swapaxes(K, -2, -1)) / jnp.sqrt(
        jnp.float32(query.shape[-1]))
    scores = scores + mask
    attn = jax.nn.softmax(scores, axis=-1)
    return attn @ V


if __name__ == "__main__":
    B, S, D = 2, 8, 32
    key0 = jax.random.PRNGKey(0)
    ks = jax.random.split(key0, 10)

    query = jax.random.normal(ks[0], (B, S, D), dtype=jnp.float32)
    key_in = jax.random.normal(ks[1], (B, S, D), dtype=jnp.float32)
    value = jax.random.normal(ks[2], (B, S, D), dtype=jnp.float32)

    # additive mask: 0 where attended, -1e9 where masked (random pattern)
    mask_bits = jax.random.bernoulli(ks[3], p=0.8, shape=(B, S, S))
    mask = jnp.where(mask_bits, 0.0, -1e9).astype(jnp.float32)

    # Deterministic parameter init (nn.Linear-like scale).
    lim = 1.0 / np.sqrt(np.float32(D))
    wq = jax.random.uniform(ks[4], (D, D), minval=-lim, maxval=lim)
    wk = jax.random.uniform(ks[5], (D, D), minval=-lim, maxval=lim)
    wv = jax.random.uniform(ks[6], (D, D), minval=-lim, maxval=lim)
    bq = jax.random.uniform(ks[7], (D,), minval=-lim, maxval=lim)
    bk = jax.random.uniform(ks[8], (D,), minval=-lim, maxval=lim)
    bv = jax.random.uniform(ks[9], (D,), minval=-lim, maxval=lim)

    out = masked_attention(query, key_in, value, mask,
                           wq, bq, wk, bk, wv, bv)
    out = jax.block_until_ready(out)

    ref = _reference(query, key_in, value, mask, wq, bq, wk, bk, wv, bv)
    assert out.shape == (B, S, D)
    # bf16 MXU operands + approx reciprocal -> looser tolerance vs f32 ref.
    assert jnp.allclose(out, ref, atol=3e-2, rtol=3e-2), (
        float(jnp.max(jnp.abs(out - ref))))
    print("KERNEL_OK")
</pallas_src>

<mosaic_0001>
module attributes {stable_mosaic.version = 11 : i64} {
  func.func @masked_attention_kernel(%arg0: i32, %arg1: memref<8x32xbf16, #tpu.memory_space<vmem>>, %arg2: memref<8x32xbf16, #tpu.memory_space<vmem>>, %arg3: memref<8x32xbf16, #tpu.memory_space<vmem>>, %arg4: memref<1x8x8xi8, #tpu.memory_space<vmem>>, %arg5: memref<32x32xbf16, #tpu.memory_space<vmem>>, %arg6: memref<1x32xf32, #tpu.memory_space<vmem>>, %arg7: memref<32x32xbf16, #tpu.memory_space<vmem>>, %arg8: memref<1x32xf32, #tpu.memory_space<vmem>>, %arg9: memref<32x32xbf16, #tpu.memory_space<vmem>>, %arg10: memref<1x32xf32, #tpu.memory_space<vmem>>, %arg11: memref<1x8x32xf32, #tpu.memory_space<vmem>>) attributes {dimension_semantics = [#tpu.dimension_semantics<parallel>], iteration_bounds = array<i64: 2>, scalar_prefetch = 0 : i64, scratch_operands = 0 : i64, tpu.core_type = #tpu.core_type<tc>, window_params = [{transform_indices = @transform_0, window_bounds = array<i64: 8, 32>}, {transform_indices = @transform_1, window_bounds = array<i64: 8, 32>}, {transform_indices = @transform_2, window_bounds = array<i64: 8, 32>}, {transform_indices = @transform_3, window_bounds = array<i64: 1, 8, 8>}, {pipeline_mode = #tpu.pipeline_mode<synchronous>, transform_indices = @transform_4, window_bounds = array<i64: 32, 32>}, {pipeline_mode = #tpu.pipeline_mode<synchronous>, transform_indices = @transform_5, window_bounds = array<i64: 1, 32>}, {pipeline_mode = #tpu.pipeline_mode<synchronous>, transform_indices = @transform_6, window_bounds = array<i64: 32, 32>}, {pipeline_mode = #tpu.pipeline_mode<synchronous>, transform_indices = @transform_7, window_bounds = array<i64: 1, 32>}, {pipeline_mode = #tpu.pipeline_mode<synchronous>, transform_indices = @transform_8, window_bounds = array<i64: 32, 32>}, {pipeline_mode = #tpu.pipeline_mode<synchronous>, transform_indices = @transform_9, window_bounds = array<i64: 1, 32>}, {transform_indices = @transform_10, window_bounds = array<i64: 1, 8, 32>}]} {
    %c0 = arith.constant 0 : index
    %c0_0 = arith.constant 0 : index
    %0 = vector.load %arg1[%c0, %c0_0] : memref<8x32xbf16, #tpu.memory_space<vmem>>, vector<8x32xbf16>
    %c0_1 = arith.constant 0 : index
    %c0_2 = arith.constant 0 : index
    %1 = vector.load %arg2[%c0_1, %c0_2] : memref<8x32xbf16, #tpu.memory_space<vmem>>, vector<8x32xbf16>
    %c0_3 = arith.constant 0 : index
    %c0_4 = arith.constant 0 : index
    %2 = vector.load %arg3[%c0_3, %c0_4] : memref<8x32xbf16, #tpu.memory_space<vmem>>, vector<8x32xbf16>
    %c0_5 = arith.constant 0 : index
    %c0_6 = arith.constant 0 : index
    %3 = vector.load %arg5[%c0_5, %c0_6] : memref<32x32xbf16, #tpu.memory_space<vmem>>, vector<32x32xbf16>
    %cst = arith.constant dense<0.000000e+00> : vector<8x32xf32>
    %4 = tpu.matmul %0, %3, %cst {dimension_numbers = #tpu.dot_dimension_numbers<[1], [0], [0], [1], [0, 0, 1, 1], [], []>} : vector<8x32xbf16>, vector<32x32xbf16>, vector<8x32xf32> -> vector<8x32xf32>
    %c0_7 = arith.constant 0 : index
    %c0_8 = arith.constant 0 : index
    %5 = vector.load %arg6[%c0_7, %c0_8] : memref<1x32xf32, #tpu.memory_space<vmem>>, vector<1x32xf32>
    %6 = vector.broadcast %5 : vector<1x32xf32> to vector<8x32xf32>
    %7 = arith.addf %4, %6 : vector<8x32xf32>
    %c0_9 = arith.constant 0 : index
    %c0_10 = arith.constant 0 : index
    %8 = vector.load %arg7[%c0_9, %c0_10] : memref<32x32xbf16, #tpu.memory_space<vmem>>, vector<32x32xbf16>
    %cst_11 = arith.constant dense<0.000000e+00> : vector<8x32xf32>
    %9 = tpu.matmul %1, %8, %cst_11 {dimension_numbers = #tpu.dot_dimension_numbers<[1], [0], [0], [1], [0, 0, 1, 1], [], []>} : vector<8x32xbf16>, vector<32x32xbf16>, vector<8x32xf32> -> vector<8x32xf32>
    %c0_12 = arith.constant 0 : index
    %c0_13 = arith.constant 0 : index
    %10 = vector.load %arg8[%c0_12, %c0_13] : memref<1x32xf32, #tpu.memory_space<vmem>>, vector<1x32xf32>
    %11 = vector.broadcast %10 : vector<1x32xf32> to vector<8x32xf32>
    %12 = arith.addf %9, %11 : vector<8x32xf32>
    %c0_14 = arith.constant 0 : index
    %c0_15 = arith.constant 0 : index
    %13 = vector.load %arg9[%c0_14, %c0_15] : memref<32x32xbf16, #tpu.memory_space<vmem>>, vector<32x32xbf16>
    %cst_16 = arith.constant dense<0.000000e+00> : vector<8x32xf32>
    %14 = tpu.matmul %2, %13, %cst_16 {dimension_numbers = #tpu.dot_dimension_numbers<[1], [0], [0], [1], [0, 0, 1, 1], [], []>} : vector<8x32xbf16>, vector<32x32xbf16>, vector<8x32xf32> -> vector<8x32xf32>
    %c0_17 = arith.constant 0 : index
    %c0_18 = arith.constant 0 : index
    %15 = vector.load %arg10[%c0_17, %c0_18] : memref<1x32xf32, #tpu.memory_space<vmem>>, vector<1x32xf32>
    %16 = vector.broadcast %15 : vector<1x32xf32> to vector<8x32xf32>
    %17 = arith.addf %14, %16 : vector<8x32xf32>
    %18 = vector.shape_cast %7 : vector<8x32xf32> to vector<1x8x32xf32>
    %19 = arith.truncf %18 : vector<1x8x32xf32> to vector<1x8x32xbf16>
    %20 = vector.shape_cast %12 : vector<8x32xf32> to vector<1x8x32xf32>
    %21 = arith.truncf %20 : vector<1x8x32xf32> to vector<1x8x32xbf16>
    %22 = vector.shape_cast %17 : vector<8x32xf32> to vector<1x8x32xf32>
    %23 = arith.truncf %22 : vector<1x8x32xf32> to vector<1x8x32xbf16>
    "tpu.trace_start"() <{level = 10 : i32, message = "bqd,bkd->bqk"}> : () -> ()
    %cst_19 = arith.constant dense<0.000000e+00> : vector<1x8x8xf32>
    %24 = tpu.matmul %19, %21, %cst_19 {dimension_numbers = #tpu.dot_dimension_numbers<[2], [2], [1], [1], [0, 0, 0, 1, 1, 1], [0], [0]>} : vector<1x8x32xbf16>, vector<1x8x32xbf16>, vector<1x8x8xf32> -> vector<1x8x8xf32>
    "tpu.trace_stop"() : () -> ()
    %c0_20 = arith.constant 0 : index
    %c0_21 = arith.constant 0 : index
    %c0_22 = arith.constant 0 : index
    %25 = vector.load %arg4[%c0_20, %c0_21, %c0_22] : memref<1x8x8xi8, #tpu.memory_space<vmem>>, vector<1x8x8xi8>
    %26 = arith.sitofp %25 : vector<1x8x8xi8> to vector<1x8x8xf32>
    %cst_23 = arith.constant 0.000000e+00 : f32
    %27 = vector.broadcast %cst_23 : f32 to vector<1x8x8xf32>
    %28 = arith.cmpf one, %26, %27 : vector<1x8x8xf32>
    %cst_24 = arith.constant -1.000000e+30 : f32
    %29 = vector.broadcast %cst_24 : f32 to vector<1x8x8xf32>
    %30 = arith.select %28, %24, %29 : vector<1x8x8xi1>, vector<1x8x8xf32>
    %cst_25 = arith.constant dense<0xFF800000> : vector<1x8xf32>
    %31 = vector.multi_reduction <maximumf>, %30, %cst_25 [2] : vector<1x8x8xf32> to vector<1x8xf32>
    %32 = vector.shape_cast %31 : vector<1x8xf32> to vector<1x8x1xf32>
    %33 = vector.broadcast %32 : vector<1x8x1xf32> to vector<1x8x8xf32>
    %34 = arith.subf %30, %33 : vector<1x8x8xf32>
    %35 = math.exp %34 : vector<1x8x8xf32>
    %cst_26 = arith.constant dense<0.000000e+00> : vector<1x8xf32>
    %36 = vector.multi_reduction <add>, %35, %cst_26 [2] : vector<1x8x8xf32> to vector<1x8xf32>
    %37 = vector.shape_cast %36 : vector<1x8xf32> to vector<1x8x1xf32>
    %38 = tpu.reciprocal %37 {approx = true} : vector<1x8x1xf32> -> vector<1x8x1xf32>
    %39 = vector.broadcast %38 : vector<1x8x1xf32> to vector<1x8x8xf32>
    %40 = arith.mulf %35, %39 : vector<1x8x8xf32>
    %41 = arith.truncf %40 : vector<1x8x8xf32> to vector<1x8x8xbf16>
    "tpu.trace_start"() <{level = 10 : i32, message = "bqk,bkd->bqd"}> : () -> ()
    %cst_27 = arith.constant dense<0.000000e+00> : vector<1x8x32xf32>
    %42 = tpu.matmul %41, %23, %cst_27 {dimension_numbers = #tpu.dot_dimension_numbers<[2], [1], [1], [2], [0, 0, 0, 1, 1, 2], [0], [0]>} : vector<1x8x8xbf16>, vector<1x8x32xbf16>, vector<1x8x32xf32> -> vector<1x8x32xf32>
    "tpu.trace_stop"() : () -> ()
    %c0_28 = arith.constant 0 : index
    %c0_29 = arith.constant 0 : index
    %c0_30 = arith.constant 0 : index
    %43 = vector.load %arg11[%c0_28, %c0_29, %c0_30] : memref<1x8x32xf32, #tpu.memory_space<vmem>>, vector<1x8x32xf32>
    tpu.vector_store %arg11[%c0_28, %c0_29, %c0_30], %42 {strides = array<i32>} : memref<1x8x32xf32, #tpu.memory_space<vmem>>, vector<1x8x32xf32>,
    return
  }
  func.func @transform_0(%arg0: i32) -> (i32, i32) {
    %c0_i32 = arith.constant 0 : i32
    %c0_i32_0 = arith.constant 0 : i32
    return %arg0, %c0_i32 : i32, i32
  }
  func.func @transform_1(%arg0: i32) -> (i32, i32) {
    %c0_i32 = arith.constant 0 : i32
    %c0_i32_0 = arith.constant 0 : i32
    return %arg0, %c0_i32 : i32, i32
  }
  func.func @transform_2(%arg0: i32) -> (i32, i32) {
    %c0_i32 = arith.constant 0 : i32
    %c0_i32_0 = arith.constant 0 : i32
    return %arg0, %c0_i32 : i32, i32
  }
  func.func @transform_3(%arg0: i32) -> (i32, i32, i32) {
    %c0_i32 = arith.constant 0 : i32
    %c0_i32_0 = arith.constant 0 : i32
    %c0_i32_1 = arith.constant 0 : i32
    return %arg0, %c0_i32, %c0_i32_0 : i32, i32, i32
  }
  func.func @transform_4(%arg0: i32) -> (i32, i32) {
    %c0_i32 = arith.constant 0 : i32
    %c0_i32_0 = arith.constant 0 : i32
    %c0_i32_1 = arith.constant 0 : i32
    return %c0_i32, %c0_i32_0 : i32, i32
  }
  func.func @transform_5(%arg0: i32) -> (i32, i32) {
    %c0_i32 = arith.constant 0 : i32
    %c0_i32_0 = arith.constant 0 : i32
    %c0_i32_1 = arith.constant 0 : i32
    return %c0_i32, %c0_i32_0 : i32, i32
  }
  func.func @transform_6(%arg0: i32) -> (i32, i32) {
    %c0_i32 = arith.constant 0 : i32
    %c0_i32_0 = arith.constant 0 : i32
    %c0_i32_1 = arith.constant 0 : i32
    return %c0_i32, %c0_i32_0 : i32, i32
  }
  func.func @transform_7(%arg0: i32) -> (i32, i32) {
    %c0_i32 = arith.constant 0 : i32
    %c0_i32_0 = arith.constant 0 : i32
    %c0_i32_1 = arith.constant 0 : i32
    return %c0_i32, %c0_i32_0 : i32, i32
  }
  func.func @transform_8(%arg0: i32) -> (i32, i32) {
    %c0_i32 = arith.constant 0 : i32
    %c0_i32_0 = arith.constant 0 : i32
    %c0_i32_1 = arith.constant 0 : i32
    return %c0_i32, %c0_i32_0 : i32, i32
  }
  func.func @transform_9(%arg0: i32) -> (i32, i32) {
    %c0_i32 = arith.constant 0 : i32
    %c0_i32_0 = arith.constant 0 : i32
    %c0_i32_1 = arith.constant 0 : i32
    return %c0_i32, %c0_i32_0 : i32, i32
  }
  func.func @transform_10(%arg0: i32) -> (i32, i32, i32) {
    %c0_i32 = arith.constant 0 : i32
    %c0_i32_0 = arith.constant 0 : i32
    %c0_i32_1 = arith.constant 0 : i32
    return %arg0, %c0_i32, %c0_i32_0 : i32, i32, i32
  }
}

module attributes {stable_mosaic.version = 11 : i64} {
  func.func @masked_attention_kernel(%arg0: i32, %arg1: memref<8x32xbf16, #tpu.memory_space<vmem>>, %arg2: memref<8x32xbf16, #tpu.memory_space<vmem>>, %arg3: memref<8x32xbf16, #tpu.memory_space<vmem>>, %arg4: memref<1x8x8xi8, #tpu.memory_space<vmem>>, %arg5: memref<32x32xbf16, #tpu.memory_space<vmem>>, %arg6: memref<1x32xf32, #tpu.memory_space<vmem>>, %arg7: memref<32x32xbf16, #tpu.memory_space<vmem>>, %arg8: memref<1x32xf32, #tpu.memory_space<vmem>>, %arg9: memref<32x32xbf16, #tpu.memory_space<vmem>>, %arg10: memref<1x32xf32, #tpu.memory_space<vmem>>, %arg11: memref<1x8x32xf32, #tpu.memory_space<vmem>>) attributes {dimension_semantics = [#tpu.dimension_semantics<parallel>], iteration_bounds = array<i64: 2>, scalar_prefetch = 0 : i64, scratch_operands = 0 : i64, tpu.core_type = #tpu.core_type<tc>, window_params = [{transform_indices = @transform_0, window_bounds = array<i64: 8, 32>}, {transform_indices = @transform_1, window_bounds = array<i64: 8, 32>}, {transform_indices = @transform_2, window_bounds = array<i64: 8, 32>}, {transform_indices = @transform_3, window_bounds = array<i64: 1, 8, 8>}, {pipeline_mode = #tpu.pipeline_mode<synchronous>, transform_indices = @transform_4, window_bounds = array<i64: 32, 32>}, {pipeline_mode = #tpu.pipeline_mode<synchronous>, transform_indices = @transform_5, window_bounds = array<i64: 1, 32>}, {pipeline_mode = #tpu.pipeline_mode<synchronous>, transform_indices = @transform_6, window_bounds = array<i64: 32, 32>}, {pipeline_mode = #tpu.pipeline_mode<synchronous>, transform_indices = @transform_7, window_bounds = array<i64: 1, 32>}, {pipeline_mode = #tpu.pipeline_mode<synchronous>, transform_indices = @transform_8, window_bounds = array<i64: 32, 32>}, {pipeline_mode = #tpu.pipeline_mode<synchronous>, transform_indices = @transform_9, window_bounds = array<i64: 1, 32>}, {transform_indices = @transform_10, window_bounds = array<i64: 1, 8, 32>}]} {
    %c0 = arith.constant 0 : index
    %c0_0 = arith.constant 0 : index
    %0 = vector.load %arg1[%c0, %c0_0] : memref<8x32xbf16, #tpu.memory_space<vmem>>, vector<8x32xbf16>
    %c0_1 = arith.constant 0 : index
    %c0_2 = arith.constant 0 : index
    %1 = vector.load %arg2[%c0_1, %c0_2] : memref<8x32xbf16, #tpu.memory_space<vmem>>, vector<8x32xbf16>
    %c0_3 = arith.constant 0 : index
    %c0_4 = arith.constant 0 : index
    %2 = vector.load %arg3[%c0_3, %c0_4] : memref<8x32xbf16, #tpu.memory_space<vmem>>, vector<8x32xbf16>
    %c0_5 = arith.constant 0 : index
    %c0_6 = arith.constant 0 : index
    %3 = vector.load %arg5[%c0_5, %c0_6] : memref<32x32xbf16, #tpu.memory_space<vmem>>, vector<32x32xbf16>
    %cst = arith.constant dense<0.000000e+00> : vector<8x32xf32>
    %4 = tpu.matmul %0, %3, %cst {dimension_numbers = #tpu.dot_dimension_numbers<[1], [0], [0], [1], [0, 0, 1, 1], [], []>} : vector<8x32xbf16>, vector<32x32xbf16>, vector<8x32xf32> -> vector<8x32xf32>
    %c0_7 = arith.constant 0 : index
    %c0_8 = arith.constant 0 : index
    %5 = vector.load %arg6[%c0_7, %c0_8] : memref<1x32xf32, #tpu.memory_space<vmem>>, vector<1x32xf32>
    %6 = vector.broadcast %5 : vector<1x32xf32> to vector<8x32xf32>
    %7 = arith.addf %4, %6 : vector<8x32xf32>
    %c0_9 = arith.constant 0 : index
    %c0_10 = arith.constant 0 : index
    %8 = vector.load %arg7[%c0_9, %c0_10] : memref<32x32xbf16, #tpu.memory_space<vmem>>, vector<32x32xbf16>
    %cst_11 = arith.constant dense<0.000000e+00> : vector<8x32xf32>
    %9 = tpu.matmul %1, %8, %cst_11 {dimension_numbers = #tpu.dot_dimension_numbers<[1], [0], [0], [1], [0, 0, 1, 1], [], []>} : vector<8x32xbf16>, vector<32x32xbf16>, vector<8x32xf32> -> vector<8x32xf32>
    %c0_12 = arith.constant 0 : index
    %c0_13 = arith.constant 0 : index
    %10 = vector.load %arg8[%c0_12, %c0_13] : memref<1x32xf32, #tpu.memory_space<vmem>>, vector<1x32xf32>
    %11 = vector.broadcast %10 : vector<1x32xf32> to vector<8x32xf32>
    %12 = arith.addf %9, %11 : vector<8x32xf32>
    %c0_14 = arith.constant 0 : index
    %c0_15 = arith.constant 0 : index
    %13 = vector.load %arg9[%c0_14, %c0_15] : memref<32x32xbf16, #tpu.memory_space<vmem>>, vector<32x32xbf16>
    %cst_16 = arith.constant dense<0.000000e+00> : vector<8x32xf32>
    %14 = tpu.matmul %2, %13, %cst_16 {dimension_numbers = #tpu.dot_dimension_numbers<[1], [0], [0], [1], [0, 0, 1, 1], [], []>} : vector<8x32xbf16>, vector<32x32xbf16>, vector<8x32xf32> -> vector<8x32xf32>
    %c0_17 = arith.constant 0 : index
    %c0_18 = arith.constant 0 : index
    %15 = vector.load %arg10[%c0_17, %c0_18] : memref<1x32xf32, #tpu.memory_space<vmem>>, vector<1x32xf32>
    %16 = vector.broadcast %15 : vector<1x32xf32> to vector<8x32xf32>
    %17 = arith.addf %14, %16 : vector<8x32xf32>
    %18 = vector.shape_cast %7 : vector<8x32xf32> to vector<1x8x32xf32>
    %19 = arith.truncf %18 : vector<1x8x32xf32> to vector<1x8x32xbf16>
    %20 = vector.shape_cast %12 : vector<8x32xf32> to vector<1x8x32xf32>
    %21 = arith.truncf %20 : vector<1x8x32xf32> to vector<1x8x32xbf16>
    %22 = vector.shape_cast %17 : vector<8x32xf32> to vector<1x8x32xf32>
    %23 = arith.truncf %22 : vector<1x8x32xf32> to vector<1x8x32xbf16>
    "tpu.trace_start"() <{level = 10 : i32, message = "bqd,bkd->bqk"}> : () -> ()
    %cst_19 = arith.constant dense<0.000000e+00> : vector<1x8x8xf32>
    %24 = tpu.matmul %19, %21, %cst_19 {dimension_numbers = #tpu.dot_dimension_numbers<[2], [2], [1], [1], [0, 0, 0, 1, 1, 1], [0], [0]>} : vector<1x8x32xbf16>, vector<1x8x32xbf16>, vector<1x8x8xf32> -> vector<1x8x8xf32>
    "tpu.trace_stop"() : () -> ()
    %c0_20 = arith.constant 0 : index
    %c0_21 = arith.constant 0 : index
    %c0_22 = arith.constant 0 : index
    %25 = vector.load %arg4[%c0_20, %c0_21, %c0_22] : memref<1x8x8xi8, #tpu.memory_space<vmem>>, vector<1x8x8xi8>
    %26 = arith.sitofp %25 : vector<1x8x8xi8> to vector<1x8x8xf32>
    %cst_23 = arith.constant 0.000000e+00 : f32
    %27 = vector.broadcast %cst_23 : f32 to vector<1x8x8xf32>
    %28 = arith.cmpf one, %26, %27 : vector<1x8x8xf32>
    %cst_24 = arith.constant -1.000000e+30 : f32
    %29 = vector.broadcast %cst_24 : f32 to vector<1x8x8xf32>
    %30 = arith.select %28, %24, %29 : vector<1x8x8xi1>, vector<1x8x8xf32>
    %cst_25 = arith.constant dense<0xFF800000> : vector<1x8xf32>
    %31 = vector.multi_reduction <maximumf>, %30, %cst_25 [2] : vector<1x8x8xf32> to vector<1x8xf32>
    %32 = vector.shape_cast %31 : vector<1x8xf32> to vector<1x8x1xf32>
    %33 = vector.broadcast %32 : vector<1x8x1xf32> to vector<1x8x8xf32>
    %34 = arith.subf %30, %33 : vector<1x8x8xf32>
    %35 = math.exp %34 : vector<1x8x8xf32>
    %cst_26 = arith.constant dense<0.000000e+00> : vector<1x8xf32>
    %36 = vector.multi_reduction <add>, %35, %cst_26 [2] : vector<1x8x8xf32> to vector<1x8xf32>
    %37 = vector.shape_cast %36 : vector<1x8xf32> to vector<1x8x1xf32>
    %38 = tpu.reciprocal %37 {approx = true} : vector<1x8x1xf32> -> vector<1x8x1xf32>
    %39 = vector.broadcast %38 : vector<1x8x1xf32> to vector<1x8x8xf32>
    %40 = arith.mulf %35, %39 : vector<1x8x8xf32>
    %41 = arith.truncf %40 : vector<1x8x8xf32> to vector<1x8x8xbf16>
    "tpu.trace_start"() <{level = 10 : i32, message = "bqk,bkd->bqd"}> : () -> ()
    %cst_27 = arith.constant dense<0.000000e+00> : vector<1x8x32xf32>
    %42 = tpu.matmul %41, %23, %cst_27 {dimension_numbers = #tpu.dot_dimension_numbers<[2], [1], [1], [2], [0, 0, 0, 1, 1, 2], [0], [0]>} : vector<1x8x8xbf16>, vector<1x8x32xbf16>, vector<1x8x32xf32> -> vector<1x8x32xf32>
    "tpu.trace_stop"() : () -> ()
    %c0_28 = arith.constant 0 : index
    %c0_29 = arith.constant 0 : index
    %c0_30 = arith.constant 0 : index
    %43 = vector.load %arg11[%c0_28, %c0_29, %c0_30] : memref<1x8x32xf32, #tpu.memory_space<vmem>>, vector<1x8x32xf32>
    tpu.vector_store %arg11[%c0_28, %c0_29, %c0_30], %42 {strides = array<i32>} : memref<1x8x32xf32, #tpu.memory_space<vmem>>, vector<1x8x32xf32>,
    return
  }
  func.func @transform_0(%arg0: i32) -> (i32, i32) {
    %c0_i32 = arith.constant 0 : i32
    %c0_i32_0 = arith.constant 0 : i32
    return %arg0, %c0_i32 : i32, i32
  }
  func.func @transform_1(%arg0: i32) -> (i32, i32) {
    %c0_i32 = arith.constant 0 : i32
    %c0_i32_0 = arith.constant 0 : i32
    return %arg0, %c0_i32 : i32, i32
  }
  func.func @transform_2(%arg0: i32) -> (i32, i32) {
    %c0_i32 = arith.constant 0 : i32
    %c0_i32_0 = arith.constant 0 : i32
    return %arg0, %c0_i32 : i32, i32
  }
  func.func @transform_3(%arg0: i32) -> (i32, i32, i32) {
    %c0_i32 = arith.constant 0 : i32
    %c0_i32_0 = arith.constant 0 : i32
    %c0_i32_1 = arith.constant 0 : i32
    return %arg0, %c0_i32, %c0_i32_0 : i32, i32, i32
  }
  func.func @transform_4(%arg0: i32) -> (i32, i32) {
    %c0_i32 = arith.constant 0 : i32
    %c0_i32_0 = arith.constant 0 : i32
    %c0_i32_1 = arith.constant 0 : i32
    return %c0_i32, %c0_i32_0 : i32, i32
  }
  func.func @transform_5(%arg0: i32) -> (i32, i32) {
    %c0_i32 = arith.constant 0 : i32
    %c0_i32_0 = arith.constant 0 : i32
    %c0_i32_1 = arith.constant 0 : i32
    return %c0_i32, %c0_i32_0 : i32, i32
  }
  func.func @transform_6(%arg0: i32) -> (i32, i32) {
    %c0_i32 = arith.constant 0 : i32
    %c0_i32_0 = arith.constant 0 : i32
    %c0_i32_1 = arith.constant 0 : i32
    return %c0_i32, %c0_i32_0 : i32, i32
  }
  func.func @transform_7(%arg0: i32) -> (i32, i32) {
    %c0_i32 = arith.constant 0 : i32
    %c0_i32_0 = arith.constant 0 : i32
    %c0_i32_1 = arith.constant 0 : i32
    return %c0_i32, %c0_i32_0 : i32, i32
  }
  func.func @transform_8(%arg0: i32) -> (i32, i32) {
    %c0_i32 = arith.constant 0 : i32
    %c0_i32_0 = arith.constant 0 : i32
    %c0_i32_1 = arith.constant 0 : i32
    return %c0_i32, %c0_i32_0 : i32, i32
  }
  func.func @transform_9(%arg0: i32) -> (i32, i32) {
    %c0_i32 = arith.constant 0 : i32
    %c0_i32_0 = arith.constant 0 : i32
    %c0_i32_1 = arith.constant 0 : i32
    return %c0_i32, %c0_i32_0 : i32, i32
  }
  func.func @transform_10(%arg0: i32) -> (i32, i32, i32) {
    %c0_i32 = arith.constant 0 : i32
    %c0_i32_0 = arith.constant 0 : i32
    %c0_i32_1 = arith.constant 0 : i32
    return %arg0, %c0_i32, %c0_i32_0 : i32, i32, i32
  }
}

</mosaic_0001>

<llo_original>
// kernel: tpu_custom_call.1
$region0: #{tpu_custom_call.1}
  #allocation0 [shape = 'u32[]', space=smem, size = 0x4, offset = 0x4, fixed_abs, tag = 'smem constant byte address 0x4 - core index']
  #allocation1 [shape = 'u32[144,128]{1,0:T(1,128)}', space=vmem, size = 0x12000, scoped, tag = 'internal scratch']
  %s0 = inlined_call_operand.hbm [shape: bf16[16,32], index: 0, kind: input, shape index: {}]
  %s1 = inlined_call_operand.hbm [shape: bf16[16,32], index: 1, kind: input, shape index: {}]
  %s2 = inlined_call_operand.hbm [shape: bf16[16,32], index: 2, kind: input, shape index: {}]
  %s3 = inlined_call_operand.vmem [shape: s8[2,8,8], index: 3, kind: input, shape index: {}]
  %s4 = inlined_call_operand.hbm [shape: bf16[32,32], index: 4, kind: input, shape index: {}]
  %s5 = inlined_call_operand.vmem [shape: f32[1,32], index: 5, kind: input, shape index: {}]
  %s6 = inlined_call_operand.vmem [shape: bf16[32,32], index: 6, kind: input, shape index: {}]
  %s7 = inlined_call_operand.vmem [shape: f32[1,32], index: 7, kind: input, shape index: {}]
  %s8 = inlined_call_operand.hbm [shape: bf16[32,32], index: 8, kind: input, shape index: {}]
  %s9 = inlined_call_operand.vmem [shape: f32[1,32], index: 9, kind: input, shape index: {}]
  %s10 = inlined_call_operand.hbm [shape: f32[2,8,32], index: 10, kind: output, shape index: {}]
  %s11 = sld [smem:[#allocation0]]
  $region93: #{tpu_custom_call.1} parent=0
    _
  %s13 = ssub.s32 1, %s11
  %s14 = scalar_select 0, %s13, %s11
  $region1: #{tpu_custom_call.1} parent=0
    #allocation2 [shape = 'u8[4096]{0}', space=vmem, size = 0x1000, scoped, tag = 'input window, operand 0']
    #allocation3 [shape = 's32[2]{0}', space=sflag, size = 0x8, scoped, tag = 'scoped memory for tpu_custom_call.1']
    #allocation4 [shape = 's32[2]{0}', space=sflag, size = 0x8, scoped, tag = 'scoped memory for tpu_custom_call.1']
    #allocation5 [shape = 'u8[4096]{0}', space=vmem, size = 0x1000, scoped, tag = 'input window, operand 1']
    #allocation6 [shape = 's32[2]{0}', space=sflag, size = 0x8, scoped, tag = 'scoped memory for tpu_custom_call.1']
    #allocation7 [shape = 'u8[4096]{0}', space=vmem, size = 0x1000, scoped, tag = 'input window, operand 2']
    #allocation8 [shape = 'u8[8192]{0}', space=vmem, size = 0x2000, scoped, tag = 'input window, operand 4, single buffered']
    #allocation9 [shape = 's32[1]{0}', space=sflag, size = 0x4, scoped, tag = 'scoped memory for tpu_custom_call.1']
    #allocation10 [shape = 'u8[8192]{0}', space=vmem, size = 0x2000, scoped, tag = 'input window, operand 8, single buffered']
    #allocation11 [shape = 'u8[8192]{0}', space=vmem, size = 0x2000, scoped, tag = 'output window, operand 0']
    %15 = vsyncpa [#allocation3], 0
    %s16 = scalar_lea.sflag [#allocation3], 1
    %17 = vsyncpa %s16, 0
    %18 = vsyncpa [#allocation6], 0
    %s19 = scalar_lea.sflag [#allocation6], 1
    %20 = vsyncpa %s19, 0
    %21 = vsyncpa [#allocation9], 0
    %22 = vsyncpa [#allocation4], 0
    %s23 = scalar_lea.sflag [#allocation4], 1
    %24 = vsyncpa %s23, 0
    loop: start=0, step=1, limit=4
    $region2: #{tpu_custom_call.1} parent=1 // loop_pre_header
      _
    $region3: #{tpu_custom_call.1} parent=1 // loop_header
      %s26 = sphi 0, %s30
      %p27 = scmp.ge.s32.totalorder %s26, 4
      %s36 = sphi 0, %s38
      %s39 = sphi 0, %s36
      %s40 = sphi 0, %s39
      %s56 = sphi 0, %s40
      %s62 = sphi 0, %s64
      %s65 = sphi 0, %s62
      %s66 = sphi 0, %s65
      %s82 = sphi 0, %s66
      %s88 = sphi 0, %s90
      %s91 = sphi 0, %s88
      %s92 = sphi 0, %s91
      %s108 = sphi 0, %s92
      %s114 = sphi 0, %s116
      %s117 = sphi 0, %s114
      %s118 = sphi 0, %s117
      %s134 = sphi 0, %s118
      %s138 = sphi 0, %s138
      %s140 = sphi 0, %s138
      %s141 = sphi 0, %s140
      %s155 = sphi 0, %s141
      %s159 = sphi 0, %s159
      %s161 = sphi 0, %s159
      %s162 = sphi 0, %s161
      %s176 = sphi 0, %s162
      %s180 = sphi 0, %s180
      %s182 = sphi 0, %s180
      %s183 = sphi 0, %s182
      %s197 = sphi 0, %s183
      %s201 = sphi 0, %s201
      %s203 = sphi 0, %s201
      %s204 = sphi 0, %s203
      %s218 = sphi 0, %s204
      %s222 = sphi 0, %s222
      %s224 = sphi 0, %s222
      %s225 = sphi 0, %s224
      %s239 = sphi 0, %s225
      %s243 = sphi 0, %s243
      %s245 = sphi 0, %s243
      %s246 = sphi 0, %s245
      %s260 = sphi 0, %s246
      %s266 = sphi 0, %s268
      %s269 = sphi 0, %s266
      %s270 = sphi 0, %s269
      %s286 = sphi 0, %s270
    $region4: #{tpu_custom_call.1} parent=1 // loop_header_branch
      %29 = sbr.rel (%p27) target = $region8
    $region5: #{tpu_custom_call.1} parent=1 // loop_body
      %s31 = ssub.s32 %s26, 1
      %s32 = ssub.s32 %s26, 2
      %s33 = sadd.s32 %s26, 1
      %s34 = ssub.s32 %s26, %s33
      %p35 = scmp.eq.s32.totalorder %s34, 0
      %s37 = sadd.s32 %s36, 1
      %s38 = scalar_select %p35, %s36, %s37
      %p41 = pneg %p35
      %p42 = scmp.eq.s32.totalorder %s26, 1
      %p43 = por %p41, %p42
      %p44 = scmp.ne.s32.totalorder %s36, %s39
      %p45 = scmp.eq.s32.totalorder %s26, 0
      %p46 = por %p44, %p45
      %p47 = scmp.ne.s32.totalorder %s36, %s39
      %p48 = scmp.eq.s32.totalorder %s31, 1
      %p49 = por %p47, %p48
      %p50 = scmp.ne.s32.totalorder %s39, %s40
      %p51 = scmp.eq.s32.totalorder %s31, 0
      %p52 = por %p50, %p51
      %p53 = scmp.ne.s32.totalorder %s39, %s40
      %p54 = scmp.eq.s32.totalorder %s32, 1
      %p55 = por %p53, %p54
      %p57 = scmp.ne.s32.totalorder %s40, %s56
      %p58 = scmp.eq.s32.totalorder %s32, 0
      %p59 = por %p57, %p58
      %s60 = ssub.s32 %s26, %s33
      %p61 = scmp.eq.s32.totalorder %s60, 0
      %s63 = sadd.s32 %s62, 1
      %s64 = scalar_select %p61, %s62, %s63
      %p67 = pneg %p61
      %p68 = scmp.eq.s32.totalorder %s26, 1
      %p69 = por %p67, %p68
      %p70 = scmp.ne.s32.totalorder %s62, %s65
      %p71 = scmp.eq.s32.totalorder %s26, 0
      %p72 = por %p70, %p71
      %p73 = scmp.ne.s32.totalorder %s62, %s65
      %p74 = scmp.eq.s32.totalorder %s31, 1
      %p75 = por %p73, %p74
      %p76 = scmp.ne.s32.totalorder %s65, %s66
      %p77 = scmp.eq.s32.totalorder %s31, 0
      %p78 = por %p76, %p77
      %p79 = scmp.ne.s32.totalorder %s65, %s66
      %p80 = scmp.eq.s32.totalorder %s32, 1
      %p81 = por %p79, %p80
      %p83 = scmp.ne.s32.totalorder %s66, %s82
      %p84 = scmp.eq.s32.totalorder %s32, 0
      %p85 = por %p83, %p84
      %s86 = ssub.s32 %s26, %s33
      %p87 = scmp.eq.s32.totalorder %s86, 0
      %s89 = sadd.s32 %s88, 1
      %s90 = scalar_select %p87, %s88, %s89
      %p93 = pneg %p87
      %p94 = scmp.eq.s32.totalorder %s26, 1
      %p95 = por %p93, %p94
      %p96 = scmp.ne.s32.totalorder %s88, %s91
      %p97 = scmp.eq.s32.totalorder %s26, 0
      %p98 = por %p96, %p97
      %p99 = scmp.ne.s32.totalorder %s88, %s91
      %p100 = scmp.eq.s32.totalorder %s31, 1
      %p101 = por %p99, %p100
      %p102 = scmp.ne.s32.totalorder %s91, %s92
      %p103 = scmp.eq.s32.totalorder %s31, 0
      %p104 = por %p102, %p103
      %p105 = scmp.ne.s32.totalorder %s91, %s92
      %p106 = scmp.eq.s32.totalorder %s32, 1
      %p107 = por %p105, %p106
      %p109 = scmp.ne.s32.totalorder %s92, %s108
      %p110 = scmp.eq.s32.totalorder %s32, 0
      %p111 = por %p109, %p110
      %s112 = ssub.s32 %s26, %s33
      %p113 = scmp.eq.s32.totalorder %s112, 0
      %s115 = sadd.s32 %s114, 1
      %s116 = scalar_select %p113, %s114, %s115
      %p119 = pneg %p113
      %p120 = scmp.eq.s32.totalorder %s26, 1
      %p121 = por %p119, %p120
      %p122 = scmp.ne.s32.totalorder %s114, %s117
      %p123 = scmp.eq.s32.totalorder %s26, 0
      %p124 = por %p122, %p123
      %p125 = scmp.ne.s32.totalorder %s114, %s117
      %p126 = scmp.eq.s32.totalorder %s31, 1
      %p127 = por %p125, %p126
      %p128 = scmp.ne.s32.totalorder %s117, %s118
      %p129 = scmp.eq.s32.totalorder %s31, 0
      %p130 = por %p128, %p129
      %p131 = scmp.ne.s32.totalorder %s117, %s118
      %p132 = scmp.eq.s32.totalorder %s32, 1
      %p133 = por %p131, %p132
      %p135 = scmp.ne.s32.totalorder %s118, %s134
      %p136 = scmp.eq.s32.totalorder %s32, 0
      %p137 = por %p135, %p136
      %s139 = sadd.s32 %s138, 1
      %p142 = scmp.eq.s32.totalorder %s26, 1
      %p143 = scmp.ne.s32.totalorder %s138, %s140
      %p144 = scmp.eq.s32.totalorder %s26, 0
      %p145 = por %p143, %p144
      %p146 = scmp.ne.s32.totalorder %s138, %s140
      %p147 = scmp.eq.s32.totalorder %s31, 1
      %p148 = por %p146, %p147
      %p149 = scmp.ne.s32.totalorder %s140, %s141
      %p150 = scmp.eq.s32.totalorder %s31, 0
      %p151 = por %p149, %p150
      %p152 = scmp.ne.s32.totalorder %s140, %s141
      %p153 = scmp.eq.s32.totalorder %s32, 1
      %p154 = por %p152, %p153
      %p156 = scmp.ne.s32.totalorder %s141, %s155
      %p157 = scmp.eq.s32.totalorder %s32, 0
      %p158 = por %p156, %p157
      %s160 = sadd.s32 %s159, 1
      %p163 = scmp.eq.s32.totalorder %s26, 1
      %p164 = scmp.ne.s32.totalorder %s159, %s161
      %p165 = scmp.eq.s32.totalorder %s26, 0
      %p166 = por %p164, %p165
      %p167 = scmp.ne.s32.totalorder %s159, %s161
      %p168 = scmp.eq.s32.totalorder %s31, 1
      %p169 = por %p167, %p168
      %p170 = scmp.ne.s32.totalorder %s161, %s162
      %p171 = scmp.eq.s32.totalorder %s31, 0
      %p172 = por %p170, %p171
      %p173 = scmp.ne.s32.totalorder %s161, %s162
      %p174 = scmp.eq.s32.totalorder %s32, 1
      %p175 = por %p173, %p174
      %p177 = scmp.ne.s32.totalorder %s162, %s176
      %p178 = scmp.eq.s32.totalorder %s32, 0
      %p179 = por %p177, %p178
      %s181 = sadd.s32 %s180, 1
      %p184 = scmp.eq.s32.totalorder %s26, 1
      %p185 = scmp.ne.s32.totalorder %s180, %s182
      %p186 = scmp.eq.s32.totalorder %s26, 0
      %p187 = por %p185, %p186
      %p188 = scmp.ne.s32.totalorder %s180, %s182
      %p189 = scmp.eq.s32.totalorder %s31, 1
      %p190 = por %p188, %p189
      %p191 = scmp.ne.s32.totalorder %s182, %s183
      %p192 = scmp.eq.s32.totalorder %s31, 0
      %p193 = por %p191, %p192
      %p194 = scmp.ne.s32.totalorder %s182, %s183
      %p195 = scmp.eq.s32.totalorder %s32, 1
      %p196 = por %p194, %p195
      %p198 = scmp.ne.s32.totalorder %s183, %s197
      %p199 = scmp.eq.s32.totalorder %s32, 0
      %p200 = por %p198, %p199
      %s202 = sadd.s32 %s201, 1
      %p205 = scmp.eq.s32.totalorder %s26, 1
      %p206 = scmp.ne.s32.totalorder %s201, %s203
      %p207 = scmp.eq.s32.totalorder %s26, 0
      %p208 = por %p206, %p207
      %p209 = scmp.ne.s32.totalorder %s201, %s203
      %p210 = scmp.eq.s32.totalorder %s31, 1
      %p211 = por %p209, %p210
      %p212 = scmp.ne.s32.totalorder %s203, %s204
      %p213 = scmp.eq.s32.totalorder %s31, 0
      %p214 = por %p212, %p213
      %p215 = scmp.ne.s32.totalorder %s203, %s204
      %p216 = scmp.eq.s32.totalorder %s32, 1
      %p217 = por %p215, %p216
      %p219 = scmp.ne.s32.totalorder %s204, %s218
      %p220 = scmp.eq.s32.totalorder %s32, 0
      %p221 = por %p219, %p220
      %s223 = sadd.s32 %s222, 1
      %p226 = scmp.eq.s32.totalorder %s26, 1
      %p227 = scmp.ne.s32.totalorder %s222, %s224
      %p228 = scmp.eq.s32.totalorder %s26, 0
      %p229 = por %p227, %p228
      %p230 = scmp.ne.s32.totalorder %s222, %s224
      %p231 = scmp.eq.s32.totalorder %s31, 1
      %p232 = por %p230, %p231
      %p233 = scmp.ne.s32.totalorder %s224, %s225
      %p234 = scmp.eq.s32.totalorder %s31, 0
      %p235 = por %p233, %p234
      %p236 = scmp.ne.s32.totalorder %s224, %s225
      %p237 = scmp.eq.s32.totalorder %s32, 1
      %p238 = por %p236, %p237
      %p240 = scmp.ne.s32.totalorder %s225, %s239
      %p241 = scmp.eq.s32.totalorder %s32, 0
      %p242 = por %p240, %p241
      %s244 = sadd.s32 %s243, 1
      %p247 = scmp.eq.s32.totalorder %s26, 1
      %p248 = scmp.ne.s32.totalorder %s243, %s245
      %p249 = scmp.eq.s32.totalorder %s26, 0
      %p250 = por %p248, %p249
      %p251 = scmp.ne.s32.totalorder %s243, %s245
      %p252 = scmp.eq.s32.totalorder %s31, 1
      %p253 = por %p251, %p252
      %p254 = scmp.ne.s32.totalorder %s245, %s246
      %p255 = scmp.eq.s32.totalorder %s31, 0
      %p256 = por %p254, %p255
      %p257 = scmp.ne.s32.totalorder %s245, %s246
      %p258 = scmp.eq.s32.totalorder %s32, 1
      %p259 = por %p257, %p258
      %p261 = scmp.ne.s32.totalorder %s246, %s260
      %p262 = scmp.eq.s32.totalorder %s32, 0
      %p263 = por %p261, %p262
      %s264 = ssub.s32 %s26, %s33
      %p265 = scmp.eq.s32.totalorder %s264, 0
      %s267 = sadd.s32 %s266, 1
      %s268 = scalar_select %p265, %s266, %s267
      %p271 = pneg %p265
      %p272 = scmp.eq.s32.totalorder %s26, 1
      %p273 = por %p271, %p272
      %p274 = scmp.ne.s32.totalorder %s266, %s269
      %p275 = scmp.eq.s32.totalorder %s26, 0
      %p276 = por %p274, %p275
      %p277 = scmp.ne.s32.totalorder %s266, %s269
      %p278 = scmp.eq.s32.totalorder %s31, 1
      %p279 = por %p277, %p278
      %p280 = scmp.ne.s32.totalorder %s269, %s270
      %p281 = scmp.eq.s32.totalorder %s31, 0
      %p282 = por %p280, %p281
      %p283 = scmp.ne.s32.totalorder %s269, %s270
      %p284 = scmp.eq.s32.totalorder %s32, 1
      %p285 = por %p283, %p284
      %p287 = scmp.ne.s32.totalorder %s270, %s286
      %p288 = scmp.eq.s32.totalorder %s32, 0
      %p289 = por %p287, %p288
      %p290 = scmp.le.s32.totalorder 1, %s26
      %p291 = scmp.lt.s32.totalorder %s26, 3
      %p292 = pnand %p290, %p291
      %p293 = pneg %p292
      // Predicated region
      $region9: #{tpu_custom_call.1} parent=5 // pred_check
        _
      $region10: #{tpu_custom_call.1} parent=5 // pred_check_branch
        %295 = sbr.rel (%p292) target = $region12
      $region11: #{tpu_custom_call.1} parent=5 // pred_region
        %s296 = ssub.s32 %s26, 1
        // Predicated region
        $region13: #{tpu_custom_call.1} parent=11 // pred_check
          %p297 = pneg %p151
        $region14: #{tpu_custom_call.1} parent=11 // pred_check_branch
          %299 = sbr.rel (%p297) target = $region16
        $region15: #{tpu_custom_call.1} parent=11 // pred_region
          %s301 = ssub.s32 256, 256
          %302 = vsyncadd [#allocation9], %s301
          %s303 = sshll.u32 [#allocation8], 4
          %s304 = int_to_ptr.vmem [resolvable:$true] %s303
          %309 = dma.hbm_to_vmem [thread:$0]  %s4, 256, %s304, [#allocation9], 64, 64, 4
        $region16: #{tpu_custom_call.1} parent=11 // pred_fallthru
          _
        // Predicated region
        $region17: #{tpu_custom_call.1} parent=11 // pred_check
          %p310 = pneg %p172
        $region18: #{tpu_custom_call.1} parent=11 // pred_check_branch
          %312 = sbr.rel (%p310) target = $region20
        $region19: #{tpu_custom_call.1} parent=11 // pred_region
          _
        $region20: #{tpu_custom_call.1} parent=11 // pred_fallthru
          _
        // Predicated region
        $region21: #{tpu_custom_call.1} parent=11 // pred_check
          %p313 = pneg %p193
        $region22: #{tpu_custom_call.1} parent=11 // pred_check_branch
          %315 = sbr.rel (%p313) target = $region24
        $region23: #{tpu_custom_call.1} parent=11 // pred_region
          _
        $region24: #{tpu_custom_call.1} parent=11 // pred_fallthru
          _
        // Predicated region
        $region25: #{tpu_custom_call.1} parent=11 // pred_check
          %p316 = pneg %p214
        $region26: #{tpu_custom_call.1} parent=11 // pred_check_branch
          %318 = sbr.rel (%p316) target = $region28
        $region27: #{tpu_custom_call.1} parent=11 // pred_region
          _
        $region28: #{tpu_custom_call.1} parent=11 // pred_fallthru
          _
        // Predicated region
        $region29: #{tpu_custom_call.1} parent=11 // pred_check
          %p319 = pneg %p235
        $region30: #{tpu_custom_call.1} parent=11 // pred_check_branch
          %321 = sbr.rel (%p319) target = $region32
        $region31: #{tpu_custom_call.1} parent=11 // pred_region
          %s323 = ssub.s32 256, 256
          %324 = vsyncadd [#allocation9], %s323
          %s325 = sshll.u32 [#allocation10], 4
          %s326 = int_to_ptr.vmem [resolvable:$true] %s325
          %331 = dma.hbm_to_vmem [thread:$0]  %s8, 256, %s326, [#allocation9], 64, 64, 4
        $region32: #{tpu_custom_call.1} parent=11 // pred_fallthru
          _
        // Predicated region
        $region33: #{tpu_custom_call.1} parent=11 // pred_check
          %p332 = pneg %p256
        $region34: #{tpu_custom_call.1} parent=11 // pred_check_branch
          %334 = sbr.rel (%p332) target = $region36
        $region35: #{tpu_custom_call.1} parent=11 // pred_region
          _
        $region36: #{tpu_custom_call.1} parent=11 // pred_fallthru
          _
      $region12: #{tpu_custom_call.1} parent=5 // pred_fallthru
        _
      %p335 = scmp.lt.s32.totalorder %s26, 2
      // Predicated region
      $region37: #{tpu_custom_call.1} parent=5 // pred_check
        %p336 = pneg %p335
      $region38: #{tpu_custom_call.1} parent=5 // pred_check_branch
        %338 = sbr.rel (%p336) target = $region40
      $region39: #{tpu_custom_call.1} parent=5 // pred_region
        // Predicated region
        $region41: #{tpu_custom_call.1} parent=39 // pred_check
          %p339 = pneg %p46
        $region42: #{tpu_custom_call.1} parent=39 // pred_check_branch
          %341 = sbr.rel (%p339) target = $region44
        $region43: #{tpu_custom_call.1} parent=39 // pred_region
          %s342 = sand.u32 %s36, 1
          %s343 = scalar_lea.sflag [#allocation3], %s342
          %s344 = sand.u32 %s36, 1
          %s345 = smul.addr %s344, 4
          %s346 = scalar_lea.vmem [#allocation2], %s345
          %s348 = ssub.s32 64, 64
          %349 = vsyncadd %s343, %s348
          %s350 = smul.addr %s26, 64
          %s351 = scalar_lea.hbm %s0, %s350
          %s353 = sshll.u32 %s346, 4
          %s354 = int_to_ptr.vmem [resolvable:$true] %s353
          %356 = dma.hbm_to_vmem [thread:$0]  %s351, 64, %s354, %s343
        $region44: #{tpu_custom_call.1} parent=39 // pred_fallthru
          _
        // Predicated region
        $region45: #{tpu_custom_call.1} parent=39 // pred_check
          %p357 = pneg %p72
        $region46: #{tpu_custom_call.1} parent=39 // pred_check_branch
          %359 = sbr.rel (%p357) target = $region48
        $region47: #{tpu_custom_call.1} parent=39 // pred_region
          %s360 = sand.u32 %s26, 1
          %s361 = scalar_lea.sflag [#allocation6], %s360
          %s362 = sand.u32 %s62, 1
          %s363 = smul.addr %s362, 4
          %s364 = scalar_lea.vmem [#allocation5], %s363
          %s366 = ssub.s32 64, 64
          %367 = vsyncadd %s361, %s366
          %s368 = smul.addr %s26, 64
          %s369 = scalar_lea.hbm %s1, %s368
          %s371 = sshll.u32 %s364, 4
          %s372 = int_to_ptr.vmem [resolvable:$true] %s371
          %374 = dma.hbm_to_vmem [thread:$0]  %s369, 64, %s372, %s361
        $region48: #{tpu_custom_call.1} parent=39 // pred_fallthru
          _
        // Predicated region
        $region49: #{tpu_custom_call.1} parent=39 // pred_check
          %p375 = pneg %p98
        $region50: #{tpu_custom_call.1} parent=39 // pred_check_branch
          %377 = sbr.rel (%p375) target = $region52
        $region51: #{tpu_custom_call.1} parent=39 // pred_region
          %s378 = sand.u32 %s26, 1
          %s379 = scalar_lea.sflag [#allocation6], %s378
          %s380 = sand.u32 %s88, 1
          %s381 = smul.addr %s380, 4
          %s382 = scalar_lea.vmem [#allocation7], %s381
          %s384 = ssub.s32 64, 64
          %385 = vsyncadd %s379, %s384
          %s386 = smul.addr %s26, 64
          %s387 = scalar_lea.hbm %s2, %s386
          %s389 = sshll.u32 %s382, 4
          %s390 = int_to_ptr.vmem [resolvable:$true] %s389
          %392 = dma.hbm_to_vmem [thread:$0]  %s387, 64, %s390, %s379
        $region52: #{tpu_custom_call.1} parent=39 // pred_fallthru
          _
        // Predicated region
        $region53: #{tpu_custom_call.1} parent=39 // pred_check
          %p393 = pneg %p124
        $region54: #{tpu_custom_call.1} parent=39 // pred_check_branch
          %395 = sbr.rel (%p393) target = $region56
        $region55: #{tpu_custom_call.1} parent=39 // pred_region
          %p396 = scmp.lt.s32.totalorder %s26, 1
          %s397 = scalar_select %p396, %s26, 1
          %s398 = smul.addr %s397, 2
          %s399 = scalar_lea.vmem %s3, %s398
        $region56: #{tpu_custom_call.1} parent=39 // pred_fallthru
          _
      $region40: #{tpu_custom_call.1} parent=5 // pred_fallthru
        _
      %p400 = scmp.le.s32.totalorder 1, %s26
      %p401 = scmp.lt.s32.totalorder %s26, 3
      %p402 = pnand %p400, %p401
      %p403 = pneg %p402
      // Predicated region
      $region57: #{tpu_custom_call.1} parent=5 // pred_check
        _
      $region58: #{tpu_custom_call.1} parent=5 // pred_check_branch
        %405 = sbr.rel (%p402) target = $region60
      $region59: #{tpu_custom_call.1} parent=5 // pred_region
        %s406 = ssub.s32 %s26, 1
        %s407 = sand.u32 %s39, 1
        %s408 = scalar_lea.sflag [#allocation3], %s407
        %s409 = sand.u32 %s39, 1
        %s410 = smul.addr %s409, 4
        %s411 = scalar_lea.vmem [#allocation2], %s410
        // Predicated region
        $region61: #{tpu_custom_call.1} parent=59 // pred_check
          %p412 = pneg %p52
        $region62: #{tpu_custom_call.1} parent=59 // pred_check_branch
          %414 = sbr.rel (%p412) target = $region64
        $region63: #{tpu_custom_call.1} parent=59 // pred_region
          %415 = dma.done %s408, 64
        $region64: #{tpu_custom_call.1} parent=59 // pred_fallthru
          _
        %s416 = sand.u32 %s31, 1
        %s417 = scalar_lea.sflag [#allocation6], %s416
        %s418 = sand.u32 %s65, 1
        %s419 = smul.addr %s418, 4
        %s420 = scalar_lea.vmem [#allocation5], %s419
        // Predicated region
        $region65: #{tpu_custom_call.1} parent=59 // pred_check
          %p421 = pneg %p78
        $region66: #{tpu_custom_call.1} parent=59 // pred_check_branch
          %423 = sbr.rel (%p421) target = $region68
        $region67: #{tpu_custom_call.1} parent=59 // pred_region
          %424 = dma.done %s417, 64
        $region68: #{tpu_custom_call.1} parent=59 // pred_fallthru
          _
        %s425 = sand.u32 %s31, 1
        %s426 = scalar_lea.sflag [#allocation6], %s425
        %s427 = sand.u32 %s91, 1
        %s428 = smul.addr %s427, 4
        %s429 = scalar_lea.vmem [#allocation7], %s428
        // Predicated region
        $region69: #{tpu_custom_call.1} parent=59 // pred_check
          %p430 = pneg %p104
        $region70: #{tpu_custom_call.1} parent=59 // pred_check_branch
          %432 = sbr.rel (%p430) target = $region72
        $region71: #{tpu_custom_call.1} parent=59 // pred_region
          %433 = dma.done %s426, 64
        $region72: #{tpu_custom_call.1} parent=59 // pred_fallthru
          _
        // Predicated region
        $region73: #{tpu_custom_call.1} parent=59 // pred_check
          %p434 = pneg %p151
        $region74: #{tpu_custom_call.1} parent=59 // pred_check_branch
          %436 = sbr.rel (%p434) target = $region76
        $region75: #{tpu_custom_call.1} parent=59 // pred_region
          %437 = dma.done [#allocation9], 256
        $region76: #{tpu_custom_call.1} parent=59 // pred_fallthru
          _
        // Predicated region
        $region77: #{tpu_custom_call.1} parent=59 // pred_check
          %p438 = pneg %p235
        $region78: #{tpu_custom_call.1} parent=59 // pred_check_branch
          %440 = sbr.rel (%p438) target = $region80
        $region79: #{tpu_custom_call.1} parent=59 // pred_region
          %441 = dma.done [#allocation9], 256
        $region80: #{tpu_custom_call.1} parent=59 // pred_fallthru
          _
        %s442 = sand.u32 %s39, 1
        %s443 = scalar_lea.sflag [#allocation3], %s442
        %s444 = sand.u32 %s39, 1
        %s445 = smul.addr %s444, 4
        %s446 = scalar_lea.vmem [#allocation2], %s445
        %p447 = pneg %p52
        %p448 = pneg %p49
        %s449 = sand.u32 %s31, 1
        %s450 = scalar_lea.sflag [#allocation6], %s449
        %s451 = sand.u32 %s65, 1
        %s452 = smul.addr %s451, 4
        %s453 = scalar_lea.vmem [#allocation5], %s452
        %p454 = pneg %p78
        %p455 = pneg %p75
        %s456 = sand.u32 %s31, 1
        %s457 = scalar_lea.sflag [#allocation6], %s456
        %s458 = sand.u32 %s91, 1
        %s459 = smul.addr %s458, 4
        %s460 = scalar_lea.vmem [#allocation7], %s459
        %p461 = pneg %p104
        %p462 = pneg %p101
        %p463 = scmp.lt.s32.totalorder %s31, 1
        %s464 = scalar_select %p463, %s31, 1
        %s465 = smul.addr %s464, 2
        %s466 = scalar_lea.vmem %s3, %s465
        %p467 = pneg %p130
        %p468 = pneg %p127
        %p469 = pneg %p151
        %p470 = pneg %p148
        %p471 = pneg %p172
        %p472 = pneg %p169
        %p473 = pneg %p193
        %p474 = pneg %p190
        %p475 = pneg %p214
        %p476 = pneg %p211
        %p477 = pneg %p235
        %p478 = pneg %p232
        %p479 = pneg %p256
        %p480 = pneg %p253
        %p481 = pneg %p282
        %p482 = pneg %p279
        %s483 = sand.u32 %s269, 1
        %s484 = scalar_lea.sflag [#allocation4], %s483
        %s485 = sand.u32 %s269, 1
        %s486 = smul.addr %s485, 8
        %s487 = scalar_lea.vmem [#allocation11], %s486
        %p488 = scmp.lt.s32.totalorder %s31, 1
        %s489 = scalar_select %p488, %s31, 1
        %s490 = smul.addr %s489, 2
        %s491 = scalar_lea.vmem %s3, %s490
        %v493 = vld [vmem:[%s411] sm:$0xf]
        %v494 = vld [vmem:[%s420] sm:$0xf]
        %v495 = vld [vmem:[%s429] sm:$0xf]
        %v496 = vld [vmem:[#allocation8] sm:$0xf]
        %v497 = vld [vmem:[#allocation8 + $0x4] sm:$0xf]
        %v498 = vld [vmem:[#allocation8 + $0x8] sm:$0xf]
        %v499 = vld [vmem:[#allocation8 + $0xc] sm:$0xf]
        %v500 = vld [vmem:[%s5] sm:$0x1]
        %v502 = vlaneseq
        %v503 = vshrl.u32 %v502, 7
        %v504 = vsub.s32 0, %v503
        %v505 = vrot.slane %v500, %v504
        %v511 = vunpack.c.l.b16 %v496
        %v512 = vunpack.c.l.b16 %v497
        %v513 = vunpack.c.l.b16 %v498
        %v514 = vunpack.c.l.b16 %v499
        %v515 = vpack.c.b16 %v512, %v511
        %v516 = vpack.c.b16 %v514, %v513
        %vm519 = vcmask 261120
        %v521 = vsel %vm519, %v493, 0
        %523 = vmatprep.subr.bf16.mxu0 0
        %524 = vmatpush1.bf16.msra.mxu0 %v515
        %525 = vmatprep.subr.bf16.mxu0 0
        %526 = vmatpush1.bf16.msra.mxu0 %v516
        %527 = vmatprep.subr.bf16.mxu0 0
        %528 = vmatpush1.bf16.msra.mxu0 0
        %529 = vmatprep.subr.bf16.mxu0 0
        %530 = vmatpush1.bf16.msra.mxu0 0
        %531 = vmatprep.subr.bf16.mxu0 0
        %532 = vmatpush1.bf16.msra.mxu0 0
        %533 = vmatprep.subr.bf16.mxu0 0
        %534 = vmatpush1.bf16.msra.mxu0 0
        %535 = vmatprep.subr.bf16.mxu0 0
        %536 = vmatpush1.bf16.msra.mxu0 0
        %537 = vmatprep.subr.bf16.mxu0 0
        %538 = vmatpush1.bf16.msra.mxu0 0
        %539 = vmatprep.subr.bf16.mxu0 0
        %540 = vmatpush1.bf16.msra.mxu0 0
        %541 = vmatprep.subr.bf16.mxu0 0
        %542 = vmatpush1.bf16.msra.mxu0 0
        %543 = vmatprep.subr.bf16.mxu0 0
        %544 = vmatpush1.bf16.msra.mxu0 0
        %545 = vmatprep.subr.bf16.mxu0 0
        %546 = vmatpush1.bf16.msra.mxu0 0
        %547 = vmatprep.subr.bf16.mxu0 0
        %548 = vmatpush1.bf16.msra.mxu0 0
        %549 = vmatprep.subr.bf16.mxu0 0
        %550 = vmatpush1.bf16.msra.mxu0 0
        %551 = vmatprep.subr.bf16.mxu0 0
        %552 = vmatpush1.bf16.msra.mxu0 0
        %553 = vmatprep.subr.bf16.mxu0 0
        %554 = vmatpush1.bf16.msra.mxu0 0
        %555 = vmatprep.mubr.bf16.mxu0 0
        %556 = vmatmul.mubr.bf16.gmra.mrb[0].mxu0 %v521
        %v557 = vpop.f32.mrb[0].mxu0
        %v558 = vadd.f32 %v505, %v557
        %v559 = vpop.f32.mrb[0].mxu0
        %v560 = vpop.f32.mrb[0].mxu0
        %v561 = vpop.f32.mrb[0].mxu0
        %562 = vdwg.mxu0
        %v563 = vld [vmem:[%s6] sm:$0xf]
        %v564 = vld [vmem:[%s6 + $0x4] sm:$0xf]
        %v565 = vld [vmem:[%s6 + $0x8] sm:$0xf]
        %v566 = vld [vmem:[%s6 + $0xc] sm:$0xf]
        %v567 = vld [vmem:[%s7] sm:$0x1]
        %v569 = vlaneseq
        %v570 = vshrl.u32 %v569, 7
        %v571 = vsub.s32 0, %v570
        %v572 = vrot.slane %v567, %v571
        %v578 = vunpack.c.l.b16 %v563
        %v579 = vunpack.c.l.b16 %v564
        %v580 = vunpack.c.l.b16 %v565
        %v581 = vunpack.c.l.b16 %v566
        %v582 = vpack.c.b16 %v579, %v578
        %v583 = vpack.c.b16 %v581, %v580
        %v587 = vsel %vm519, %v494, 0
        %589 = vmatprep.subr.bf16.mxu0 0
        %590 = vmatpush1.bf16.msra.mxu0 %v582
        %591 = vmatprep.subr.bf16.mxu0 0
        %592 = vmatpush1.bf16.msra.mxu0 %v583
        %593 = vmatprep.subr.bf16.mxu0 0
        %594 = vmatpush1.bf16.msra.mxu0 0
        %595 = vmatprep.subr.bf16.mxu0 0
        %596 = vmatpush1.bf16.msra.mxu0 0
        %597 = vmatprep.subr.bf16.mxu0 0
        %598 = vmatpush1.bf16.msra.mxu0 0
        %599 = vmatprep.subr.bf16.mxu0 0
        %600 = vmatpush1.bf16.msra.mxu0 0
        %601 = vmatprep.subr.bf16.mxu0 0
        %602 = vmatpush1.bf16.msra.mxu0 0
        %603 = vmatprep.subr.bf16.mxu0 0
        %604 = vmatpush1.bf16.msra.mxu0 0
        %605 = vmatprep.subr.bf16.mxu0 0
        %606 = vmatpush1.bf16.msra.mxu0 0
        %607 = vmatprep.subr.bf16.mxu0 0
        %608 = vmatpush1.bf16.msra.mxu0 0
        %609 = vmatprep.subr.bf16.mxu0 0
        %610 = vmatpush1.bf16.msra.mxu0 0
        %611 = vmatprep.subr.bf16.mxu0 0
        %612 = vmatpush1.bf16.msra.mxu0 0
        %613 = vmatprep.subr.bf16.mxu0 0
        %614 = vmatpush1.bf16.msra.mxu0 0
        %615 = vmatprep.subr.bf16.mxu0 0
        %616 = vmatpush1.bf16.msra.mxu0 0
        %617 = vmatprep.subr.bf16.mxu0 0
        %618 = vmatpush1.bf16.msra.mxu0 0
        %619 = vmatprep.subr.bf16.mxu0 0
        %620 = vmatpush1.bf16.msra.mxu0 0
        %621 = vmatprep.mubr.bf16.mxu0 0
        %622 = vmatmul.mubr.bf16.gmra.mrb[0].mxu0 %v587
        %v623 = vpop.f32.mrb[0].mxu0
        %v624 = vadd.f32 %v572, %v623
        %v625 = vpop.f32.mrb[0].mxu0
        %v626 = vpop.f32.mrb[0].mxu0
        %v627 = vpop.f32.mrb[0].mxu0
        %628 = vdwg.mxu0
        %v629 = vld [vmem:[#allocation10] sm:$0xf]
        %v630 = vld [vmem:[#allocation10 + $0x4] sm:$0xf]
        %v631 = vld [vmem:[#allocation10 + $0x8] sm:$0xf]
        %v632 = vld [vmem:[#allocation10 + $0xc] sm:$0xf]
        %v633 = vld [vmem:[%s9] sm:$0x1]
        %v635 = vlaneseq
        %v636 = vshrl.u32 %v635, 7
        %v637 = vsub.s32 0, %v636
        %v638 = vrot.slane %v633, %v637
        %v644 = vunpack.c.l.b16 %v629
        %v645 = vunpack.c.l.b16 %v630
        %v646 = vunpack.c.l.b16 %v631
        %v647 = vunpack.c.l.b16 %v632
        %v648 = vpack.c.b16 %v645, %v644
        %v649 = vpack.c.b16 %v647, %v646
        %v653 = vsel %vm519, %v495, 0
        %655 = vmatprep.subr.bf16.mxu0 0
        %656 = vmatpush1.bf16.msra.mxu0 %v648
        %657 = vmatprep.subr.bf16.mxu0 0
        %658 = vmatpush1.bf16.msra.mxu0 %v649
        %659 = vmatprep.subr.bf16.mxu0 0
        %660 = vmatpush1.bf16.msra.mxu0 0
        %661 = vmatprep.subr.bf16.mxu0 0
        %662 = vmatpush1.bf16.msra.mxu0 0
        %663 = vmatprep.subr.bf16.mxu0 0
        %664 = vmatpush1.bf16.msra.mxu0 0
        %665 = vmatprep.subr.bf16.mxu0 0
        %666 = vmatpush1.bf16.msra.mxu0 0
        %667 = vmatprep.subr.bf16.mxu0 0
        %668 = vmatpush1.bf16.msra.mxu0 0
        %669 = vmatprep.subr.bf16.mxu0 0
        %670 = vmatpush1.bf16.msra.mxu0 0
        %671 = vmatprep.subr.bf16.mxu0 0
        %672 = vmatpush1.bf16.msra.mxu0 0
        %673 = vmatprep.subr.bf16.mxu0 0
        %674 = vmatpush1.bf16.msra.mxu0 0
        %675 = vmatprep.subr.bf16.mxu0 0
        %676 = vmatpush1.bf16.msra.mxu0 0
        %677 = vmatprep.subr.bf16.mxu0 0
        %678 = vmatpush1.bf16.msra.mxu0 0
        %679 = vmatprep.subr.bf16.mxu0 0
        %680 = vmatpush1.bf16.msra.mxu0 0
        %681 = vmatprep.subr.bf16.mxu0 0
        %682 = vmatpush1.bf16.msra.mxu0 0
        %683 = vmatprep.subr.bf16.mxu0 0
        %684 = vmatpush1.bf16.msra.mxu0 0
        %685 = vmatprep.subr.bf16.mxu0 0
        %686 = vmatpush1.bf16.msra.mxu0 0
        %687 = vmatprep.mubr.bf16.mxu0 0
        %688 = vmatmul.mubr.bf16.gmra.mrb[0].mxu0 %v653
        %v689 = vpop.f32.mrb[0].mxu0
        %v690 = vadd.f32 %v638, %v689
        %v691 = vpop.f32.mrb[0].mxu0
        %v692 = vpop.f32.mrb[0].mxu0
        %v693 = vpop.f32.mrb[0].mxu0
        %694 = vdwg.mxu0
        %v695 = vpack.c.bf16 %v558, %v558
        %v696 = vpack.c.bf16 %v624, %v624
        %v697 = vpack.c.bf16 %v690, %v690
        %v699 = vsel %vm519, %v695, 0
        %v702 = vsel %vm519, %v696, 0
        %704 = vmatprep.subr.bf16.mxu0 0
        %705 = vmatpush1.bf16.xpose.msra.mxu0 %v702
        %706 = vmatprep.subr.bf16.mxu0 0
        %707 = vmatpush1.bf16.xpose.msra.mxu0 0
        %708 = vmatprep.subr.bf16.mxu0 0
        %709 = vmatpush1.bf16.xpose.msra.mxu0 0
        %710 = vmatprep.subr.bf16.mxu0 0
        %711 = vmatpush1.bf16.xpose.msra.mxu0 0
        %712 = vmatprep.subr.bf16.mxu0 0
        %713 = vmatpush1.bf16.xpose.msra.mxu0 0
        %714 = vmatprep.subr.bf16.mxu0 0
        %715 = vmatpush1.bf16.xpose.msra.mxu0 0
        %716 = vmatprep.subr.bf16.mxu0 0
        %717 = vmatpush1.bf16.xpose.msra.mxu0 0
        %718 = vmatprep.subr.bf16.mxu0 0
        %719 = vmatpush1.bf16.xpose.msra.mxu0 0
        %720 = vmatprep.subr.bf16.mxu0 0
        %721 = vmatpush1.bf16.xpose.msra.mxu0 0
        %722 = vmatprep.subr.bf16.mxu0 0
        %723 = vmatpush1.bf16.xpose.msra.mxu0 0
        %724 = vmatprep.subr.bf16.mxu0 0
        %725 = vmatpush1.bf16.xpose.msra.mxu0 0
        %726 = vmatprep.subr.bf16.mxu0 0
        %727 = vmatpush1.bf16.xpose.msra.mxu0 0
        %728 = vmatprep.subr.bf16.mxu0 0
        %729 = vmatpush1.bf16.xpose.msra.mxu0 0
        %730 = vmatprep.subr.bf16.mxu0 0
        %731 = vmatpush1.bf16.xpose.msra.mxu0 0
        %732 = vmatprep.subr.bf16.mxu0 0
        %733 = vmatpush1.bf16.xpose.msra.mxu0 0
        %734 = vmatprep.subr.bf16.mxu0 0
        %735 = vmatpush1.bf16.xpose.msra.mxu0 0
        %736 = vmatprep.mubr.bf16.mxu0 0
        %737 = vmatmul.mubr.bf16.gmra.mrb[0].mxu0 %v699
        %v738 = vpop.f32.mrb[0].mxu0
        %v739 = vadd.f32 0.0, %v738
        %v740 = vpop.f32.mrb[0].mxu0
        %v741 = vpop.f32.mrb[0].mxu0
        %v742 = vpop.f32.mrb[0].mxu0
        %743 = vdwg.mxu0
        %v744 = vld [vmem:[%s491] sm:$0x3]
        %v745 = vunpack.c.0.s8 %v744
        %v746 = vcvt.s32.f32 %v745
        %vm747 = vcmp.ne.f32.partialorder %v746, 0.0
        %v748 = vsel %vm747, %v739, -1e+30
        %vm749 = vcmask 64512
        %v750 = vsel %vm749, %v748, -inf
        %751 = vmax.xlane.f32.xlu0 %v750
        %v752 = vpop.xlane.xlu0 %751
        %v753 = vsub.f32 %v748, %v752
        %v754 = vmul.f32 %v753, 1.442695
        %v755 = vpow.pop %v754
        %v756 = vsel %vm749, %v755, 0.0
        %757 = vadd.xlane.f32.xlu0 %v756
        %v758 = vpop.xlane.xlu0 %757
        %v759 = vrcp.pop %v758
        %v760 = vmul.f32 %v755, %v759
        %v761 = vpack.c.bf16 %v760, %v760
        %v763 = vsel %vm749, %v761, 0
        %vm765 = vcmask 1043456
        %v767 = vsel %vm765, %v697, 0
        %769 = vmatprep.subr.bf16.mxu0 0
        %770 = vmatpush1.bf16.msra.mxu0 %v767
        %771 = vmatprep.subr.bf16.mxu0 0
        %772 = vmatpush1.bf16.msra.mxu0 0
        %773 = vmatprep.subr.bf16.mxu0 0
        %774 = vmatpush1.bf16.msra.mxu0 0
        %775 = vmatprep.subr.bf16.mxu0 0
        %776 = vmatpush1.bf16.msra.mxu0 0
        %777 = vmatprep.subr.bf16.mxu0 0
        %778 = vmatpush1.bf16.msra.mxu0 0
        %779 = vmatprep.subr.bf16.mxu0 0
        %780 = vmatpush1.bf16.msra.mxu0 0
        %781 = vmatprep.subr.bf16.mxu0 0
        %782 = vmatpush1.bf16.msra.mxu0 0
        %783 = vmatprep.subr.bf16.mxu0 0
        %784 = vmatpush1.bf16.msra.mxu0 0
        %785 = vmatprep.subr.bf16.mxu0 0
        %786 = vmatpush1.bf16.msra.mxu0 0
        %787 = vmatprep.subr.bf16.mxu0 0
        %788 = vmatpush1.bf16.msra.mxu0 0
        %789 = vmatprep.subr.bf16.mxu0 0
        %790 = vmatpush1.bf16.msra.mxu0 0
        %791 = vmatprep.subr.bf16.mxu0 0
        %792 = vmatpush1.bf16.msra.mxu0 0
        %793 = vmatprep.subr.bf16.mxu0 0
        %794 = vmatpush1.bf16.msra.mxu0 0
        %795 = vmatprep.subr.bf16.mxu0 0
        %796 = vmatpush1.bf16.msra.mxu0 0
        %797 = vmatprep.subr.bf16.mxu0 0
        %798 = vmatpush1.bf16.msra.mxu0 0
        %799 = vmatprep.subr.bf16.mxu0 0
        %800 = vmatpush1.bf16.msra.mxu0 0
        %801 = vmatprep.mubr.bf16.mxu0 0
        %802 = vmatmul.mubr.bf16.gmra.mrb[0].mxu0 %v763
        %v803 = vpop.f32.mrb[0].mxu0
        %v804 = vadd.f32 0.0, %v803
        %v805 = vpop.f32.mrb[0].mxu0
        %v806 = vpop.f32.mrb[0].mxu0
        %v807 = vpop.f32.mrb[0].mxu0
        %808 = vdwg.mxu0
        %809 = vst.msk [vmem:[%s487] sm:$0xff] %vm519, %v804
        %s810 = sand.u32 %s269, 1
        %s811 = scalar_lea.sflag [#allocation4], %s810
        %s812 = sand.u32 %s269, 1
        %s813 = smul.addr %s812, 8
        %s814 = scalar_lea.vmem [#allocation11], %s813
        // Predicated region
        $region81: #{tpu_custom_call.1} parent=59 // pred_check
          %p815 = pneg %p279
        $region82: #{tpu_custom_call.1} parent=59 // pred_check_branch
          %817 = sbr.rel (%p815) target = $region84
        $region83: #{tpu_custom_call.1} parent=59 // pred_region
          %s819 = ssub.s32 128, 128
          %820 = vsyncadd %s811, %s819
          %s821 = smul.addr %s31, 128
          %s822 = scalar_lea.hbm %s10, %s821
          %s824 = sshll.u32 %s814, 4
          %s825 = int_to_ptr.vmem [resolvable:$true] %s824
          %827 = dma.vmem_to_hbm [thread:$0]  %s825, 128, %s822, %s811
        $region84: #{tpu_custom_call.1} parent=59 // pred_fallthru
          _
      $region60: #{tpu_custom_call.1} parent=5 // pred_fallthru
        _
      %p828 = scmp.le.s32.totalorder 2, %s26
      // Predicated region
      $region85: #{tpu_custom_call.1} parent=5 // pred_check
        %p829 = pneg %p828
      $region86: #{tpu_custom_call.1} parent=5 // pred_check_branch
        %831 = sbr.rel (%p829) target = $region88
      $region87: #{tpu_custom_call.1} parent=5 // pred_region
        %s832 = ssub.s32 %s26, 2
        // Predicated region
        $region89: #{tpu_custom_call.1} parent=87 // pred_check
          %p833 = pneg %p285
        $region90: #{tpu_custom_call.1} parent=87 // pred_check_branch
          %835 = sbr.rel (%p833) target = $region92
        $region91: #{tpu_custom_call.1} parent=87 // pred_region
          %s836 = sand.u32 %s270, 1
          %s837 = scalar_lea.sflag [#allocation4], %s836
          %s838 = sand.u32 %s270, 1
          %s839 = smul.addr %s838, 8
          %s840 = scalar_lea.vmem [#allocation11], %s839
          %841 = dma.done %s837, 128
        $region92: #{tpu_custom_call.1} parent=87 // pred_fallthru
          _
      $region88: #{tpu_custom_call.1} parent=5 // pred_fallthru
        _
    $region6: #{tpu_custom_call.1} parent=1 // loop_footer
      %s30 = sadd.s32 1, %s26
    $region7: #{tpu_custom_call.1} parent=1 // loop_footer_branch
      %25 = sbr.rel target = $region3
    $region8: #{tpu_custom_call.1} parent=1 // loop_exit
      _
    %842 = vsyncpa [#allocation3], 1
    %s843 = scalar_lea.sflag [#allocation3], 1
    %844 = vsyncpa %s843, 1
    %845 = vsyncpa [#allocation6], 1
    %s846 = scalar_lea.sflag [#allocation6], 1
    %847 = vsyncpa %s846, 1
    %848 = vsyncpa [#allocation9], 1
    %849 = vsyncpa [#allocation4], 1
    %s850 = scalar_lea.sflag [#allocation4], 1
    %851 = vsyncpa %s850, 1

// kernel: tpu_custom_call.1
$region0: #{tpu_custom_call.1}
  #allocation0 [shape = 'u32[]', space=smem, size = 0x4, offset = 0x4, fixed_abs, tag = 'smem constant byte address 0x4 - core index']
  #allocation1 [shape = 'u32[144,128]{1,0:T(1,128)}', space=vmem, size = 0x12000, scoped, tag = 'internal scratch']
  %s0 = inlined_call_operand.hbm [shape: bf16[16,32], index: 0, kind: input, shape index: {}]
  %s1 = inlined_call_operand.hbm [shape: bf16[16,32], index: 1, kind: input, shape index: {}]
  %s2 = inlined_call_operand.hbm [shape: bf16[16,32], index: 2, kind: input, shape index: {}]
  %s3 = inlined_call_operand.vmem [shape: s8[2,8,8], index: 3, kind: input, shape index: {}]
  %s4 = inlined_call_operand.hbm [shape: bf16[32,32], index: 4, kind: input, shape index: {}]
  %s5 = inlined_call_operand.vmem [shape: f32[1,32], index: 5, kind: input, shape index: {}]
  %s6 = inlined_call_operand.vmem [shape: bf16[32,32], index: 6, kind: input, shape index: {}]
  %s7 = inlined_call_operand.vmem [shape: f32[1,32], index: 7, kind: input, shape index: {}]
  %s8 = inlined_call_operand.hbm [shape: bf16[32,32], index: 8, kind: input, shape index: {}]
  %s9 = inlined_call_operand.vmem [shape: f32[1,32], index: 9, kind: input, shape index: {}]
  %s10 = inlined_call_operand.hbm [shape: f32[2,8,32], index: 10, kind: output, shape index: {}]
  %s11 = sld [smem:[#allocation0]]
  $region93: #{tpu_custom_call.1} parent=0
    _
  %s13 = ssub.s32 1, %s11
  %s14 = scalar_select 0, %s13, %s11
  $region1: #{tpu_custom_call.1} parent=0
    #allocation2 [shape = 'u8[4096]{0}', space=vmem, size = 0x1000, scoped, tag = 'input window, operand 0']
    #allocation3 [shape = 's32[2]{0}', space=sflag, size = 0x8, scoped, tag = 'scoped memory for tpu_custom_call.1']
    #allocation4 [shape = 's32[2]{0}', space=sflag, size = 0x8, scoped, tag = 'scoped memory for tpu_custom_call.1']
    #allocation5 [shape = 'u8[4096]{0}', space=vmem, size = 0x1000, scoped, tag = 'input window, operand 1']
    #allocation6 [shape = 's32[2]{0}', space=sflag, size = 0x8, scoped, tag = 'scoped memory for tpu_custom_call.1']
    #allocation7 [shape = 'u8[4096]{0}', space=vmem, size = 0x1000, scoped, tag = 'input window, operand 2']
    #allocation8 [shape = 'u8[8192]{0}', space=vmem, size = 0x2000, scoped, tag = 'input window, operand 4, single buffered']
    #allocation9 [shape = 's32[1]{0}', space=sflag, size = 0x4, scoped, tag = 'scoped memory for tpu_custom_call.1']
    #allocation10 [shape = 'u8[8192]{0}', space=vmem, size = 0x2000, scoped, tag = 'input window, operand 8, single buffered']
    #allocation11 [shape = 'u8[8192]{0}', space=vmem, size = 0x2000, scoped, tag = 'output window, operand 0']
    %15 = vsyncpa [#allocation3], 0
    %s16 = scalar_lea.sflag [#allocation3], 1
    %17 = vsyncpa %s16, 0
    %18 = vsyncpa [#allocation6], 0
    %s19 = scalar_lea.sflag [#allocation6], 1
    %20 = vsyncpa %s19, 0
    %21 = vsyncpa [#allocation9], 0
    %22 = vsyncpa [#allocation4], 0
    %s23 = scalar_lea.sflag [#allocation4], 1
    %24 = vsyncpa %s23, 0
    loop: start=0, step=1, limit=4
    $region2: #{tpu_custom_call.1} parent=1 // loop_pre_header
      _
    $region3: #{tpu_custom_call.1} parent=1 // loop_header
      %s26 = sphi 0, %s30
      %p27 = scmp.ge.s32.totalorder %s26, 4
      %s36 = sphi 0, %s38
      %s39 = sphi 0, %s36
      %s40 = sphi 0, %s39
      %s56 = sphi 0, %s40
      %s62 = sphi 0, %s64
      %s65 = sphi 0, %s62
      %s66 = sphi 0, %s65
      %s82 = sphi 0, %s66
      %s88 = sphi 0, %s90
      %s91 = sphi 0, %s88
      %s92 = sphi 0, %s91
      %s108 = sphi 0, %s92
      %s114 = sphi 0, %s116
      %s117 = sphi 0, %s114
      %s118 = sphi 0, %s117
      %s134 = sphi 0, %s118
      %s138 = sphi 0, %s138
      %s140 = sphi 0, %s138
      %s141 = sphi 0, %s140
      %s155 = sphi 0, %s141
      %s159 = sphi 0, %s159
      %s161 = sphi 0, %s159
      %s162 = sphi 0, %s161
      %s176 = sphi 0, %s162
      %s180 = sphi 0, %s180
      %s182 = sphi 0, %s180
      %s183 = sphi 0, %s182
      %s197 = sphi 0, %s183
      %s201 = sphi 0, %s201
      %s203 = sphi 0, %s201
      %s204 = sphi 0, %s203
      %s218 = sphi 0, %s204
      %s222 = sphi 0, %s222
      %s224 = sphi 0, %s222
      %s225 = sphi 0, %s224
      %s239 = sphi 0, %s225
      %s243 = sphi 0, %s243
      %s245 = sphi 0, %s243
      %s246 = sphi 0, %s245
      %s260 = sphi 0, %s246
      %s266 = sphi 0, %s268
      %s269 = sphi 0, %s266
      %s270 = sphi 0, %s269
      %s286 = sphi 0, %s270
    $region4: #{tpu_custom_call.1} parent=1 // loop_header_branch
      %29 = sbr.rel (%p27) target = $region8
    $region5: #{tpu_custom_call.1} parent=1 // loop_body
      %s31 = ssub.s32 %s26, 1
      %s32 = ssub.s32 %s26, 2
      %s33 = sadd.s32 %s26, 1
      %s34 = ssub.s32 %s26, %s33
      %p35 = scmp.eq.s32.totalorder %s34, 0
      %s37 = sadd.s32 %s36, 1
      %s38 = scalar_select %p35, %s36, %s37
      %p41 = pneg %p35
      %p42 = scmp.eq.s32.totalorder %s26, 1
      %p43 = por %p41, %p42
      %p44 = scmp.ne.s32.totalorder %s36, %s39
      %p45 = scmp.eq.s32.totalorder %s26, 0
      %p46 = por %p44, %p45
      %p47 = scmp.ne.s32.totalorder %s36, %s39
      %p48 = scmp.eq.s32.totalorder %s31, 1
      %p49 = por %p47, %p48
      %p50 = scmp.ne.s32.totalorder %s39, %s40
      %p51 = scmp.eq.s32.totalorder %s31, 0
      %p52 = por %p50, %p51
      %p53 = scmp.ne.s32.totalorder %s39, %s40
      %p54 = scmp.eq.s32.totalorder %s32, 1
      %p55 = por %p53, %p54
      %p57 = scmp.ne.s32.totalorder %s40, %s56
      %p58 = scmp.eq.s32.totalorder %s32, 0
      %p59 = por %p57, %p58
      %s60 = ssub.s32 %s26, %s33
      %p61 = scmp.eq.s32.totalorder %s60, 0
      %s63 = sadd.s32 %s62, 1
      %s64 = scalar_select %p61, %s62, %s63
      %p67 = pneg %p61
      %p68 = scmp.eq.s32.totalorder %s26, 1
      %p69 = por %p67, %p68
      %p70 = scmp.ne.s32.totalorder %s62, %s65
      %p71 = scmp.eq.s32.totalorder %s26, 0
      %p72 = por %p70, %p71
      %p73 = scmp.ne.s32.totalorder %s62, %s65
      %p74 = scmp.eq.s32.totalorder %s31, 1
      %p75 = por %p73, %p74
      %p76 = scmp.ne.s32.totalorder %s65, %s66
      %p77 = scmp.eq.s32.totalorder %s31, 0
      %p78 = por %p76, %p77
      %p79 = scmp.ne.s32.totalorder %s65, %s66
      %p80 = scmp.eq.s32.totalorder %s32, 1
      %p81 = por %p79, %p80
      %p83 = scmp.ne.s32.totalorder %s66, %s82
      %p84 = scmp.eq.s32.totalorder %s32, 0
      %p85 = por %p83, %p84
      %s86 = ssub.s32 %s26, %s33
      %p87 = scmp.eq.s32.totalorder %s86, 0
      %s89 = sadd.s32 %s88, 1
      %s90 = scalar_select %p87, %s88, %s89
      %p93 = pneg %p87
      %p94 = scmp.eq.s32.totalorder %s26, 1
      %p95 = por %p93, %p94
      %p96 = scmp.ne.s32.totalorder %s88, %s91
      %p97 = scmp.eq.s32.totalorder %s26, 0
      %p98 = por %p96, %p97
      %p99 = scmp.ne.s32.totalorder %s88, %s91
      %p100 = scmp.eq.s32.totalorder %s31, 1
      %p101 = por %p99, %p100
      %p102 = scmp.ne.s32.totalorder %s91, %s92
      %p103 = scmp.eq.s32.totalorder %s31, 0
      %p104 = por %p102, %p103
      %p105 = scmp.ne.s32.totalorder %s91, %s92
      %p106 = scmp.eq.s32.totalorder %s32, 1
      %p107 = por %p105, %p106
      %p109 = scmp.ne.s32.totalorder %s92, %s108
      %p110 = scmp.eq.s32.totalorder %s32, 0
      %p111 = por %p109, %p110
      %s112 = ssub.s32 %s26, %s33
      %p113 = scmp.eq.s32.totalorder %s112, 0
      %s115 = sadd.s32 %s114, 1
      %s116 = scalar_select %p113, %s114, %s115
      %p119 = pneg %p113
      %p120 = scmp.eq.s32.totalorder %s26, 1
      %p121 = por %p119, %p120
      %p122 = scmp.ne.s32.totalorder %s114, %s117
      %p123 = scmp.eq.s32.totalorder %s26, 0
      %p124 = por %p122, %p123
      %p125 = scmp.ne.s32.totalorder %s114, %s117
      %p126 = scmp.eq.s32.totalorder %s31, 1
      %p127 = por %p125, %p126
      %p128 = scmp.ne.s32.totalorder %s117, %s118
      %p129 = scmp.eq.s32.totalorder %s31, 0
      %p130 = por %p128, %p129
      %p131 = scmp.ne.s32.totalorder %s117, %s118
      %p132 = scmp.eq.s32.totalorder %s32, 1
      %p133 = por %p131, %p132
      %p135 = scmp.ne.s32.totalorder %s118, %s134
      %p136 = scmp.eq.s32.totalorder %s32, 0
      %p137 = por %p135, %p136
      %s139 = sadd.s32 %s138, 1
      %p142 = scmp.eq.s32.totalorder %s26, 1
      %p143 = scmp.ne.s32.totalorder %s138, %s140
      %p144 = scmp.eq.s32.totalorder %s26, 0
      %p145 = por %p143, %p144
      %p146 = scmp.ne.s32.totalorder %s138, %s140
      %p147 = scmp.eq.s32.totalorder %s31, 1
      %p148 = por %p146, %p147
      %p149 = scmp.ne.s32.totalorder %s140, %s141
      %p150 = scmp.eq.s32.totalorder %s31, 0
      %p151 = por %p149, %p150
      %p152 = scmp.ne.s32.totalorder %s140, %s141
      %p153 = scmp.eq.s32.totalorder %s32, 1
      %p154 = por %p152, %p153
      %p156 = scmp.ne.s32.totalorder %s141, %s155
      %p157 = scmp.eq.s32.totalorder %s32, 0
      %p158 = por %p156, %p157
      %s160 = sadd.s32 %s159, 1
      %p163 = scmp.eq.s32.totalorder %s26, 1
      %p164 = scmp.ne.s32.totalorder %s159, %s161
      %p165 = scmp.eq.s32.totalorder %s26, 0
      %p166 = por %p164, %p165
      %p167 = scmp.ne.s32.totalorder %s159, %s161
      %p168 = scmp.eq.s32.totalorder %s31, 1
      %p169 = por %p167, %p168
      %p170 = scmp.ne.s32.totalorder %s161, %s162
      %p171 = scmp.eq.s32.totalorder %s31, 0
      %p172 = por %p170, %p171
      %p173 = scmp.ne.s32.totalorder %s161, %s162
      %p174 = scmp.eq.s32.totalorder %s32, 1
      %p175 = por %p173, %p174
      %p177 = scmp.ne.s32.totalorder %s162, %s176
      %p178 = scmp.eq.s32.totalorder %s32, 0
      %p179 = por %p177, %p178
      %s181 = sadd.s32 %s180, 1
      %p184 = scmp.eq.s32.totalorder %s26, 1
      %p185 = scmp.ne.s32.totalorder %s180, %s182
      %p186 = scmp.eq.s32.totalorder %s26, 0
      %p187 = por %p185, %p186
      %p188 = scmp.ne.s32.totalorder %s180, %s182
      %p189 = scmp.eq.s32.totalorder %s31, 1
      %p190 = por %p188, %p189
      %p191 = scmp.ne.s32.totalorder %s182, %s183
      %p192 = scmp.eq.s32.totalorder %s31, 0
      %p193 = por %p191, %p192
      %p194 = scmp.ne.s32.totalorder %s182, %s183
      %p195 = scmp.eq.s32.totalorder %s32, 1
      %p196 = por %p194, %p195
      %p198 = scmp.ne.s32.totalorder %s183, %s197
      %p199 = scmp.eq.s32.totalorder %s32, 0
      %p200 = por %p198, %p199
      %s202 = sadd.s32 %s201, 1
      %p205 = scmp.eq.s32.totalorder %s26, 1
      %p206 = scmp.ne.s32.totalorder %s201, %s203
      %p207 = scmp.eq.s32.totalorder %s26, 0
      %p208 = por %p206, %p207
      %p209 = scmp.ne.s32.totalorder %s201, %s203
      %p210 = scmp.eq.s32.totalorder %s31, 1
      %p211 = por %p209, %p210
      %p212 = scmp.ne.s32.totalorder %s203, %s204
      %p213 = scmp.eq.s32.totalorder %s31, 0
      %p214 = por %p212, %p213
      %p215 = scmp.ne.s32.totalorder %s203, %s204
      %p216 = scmp.eq.s32.totalorder %s32, 1
      %p217 = por %p215, %p216
      %p219 = scmp.ne.s32.totalorder %s204, %s218
      %p220 = scmp.eq.s32.totalorder %s32, 0
      %p221 = por %p219, %p220
      %s223 = sadd.s32 %s222, 1
      %p226 = scmp.eq.s32.totalorder %s26, 1
      %p227 = scmp.ne.s32.totalorder %s222, %s224
      %p228 = scmp.eq.s32.totalorder %s26, 0
      %p229 = por %p227, %p228
      %p230 = scmp.ne.s32.totalorder %s222, %s224
      %p231 = scmp.eq.s32.totalorder %s31, 1
      %p232 = por %p230, %p231
      %p233 = scmp.ne.s32.totalorder %s224, %s225
      %p234 = scmp.eq.s32.totalorder %s31, 0
      %p235 = por %p233, %p234
      %p236 = scmp.ne.s32.totalorder %s224, %s225
      %p237 = scmp.eq.s32.totalorder %s32, 1
      %p238 = por %p236, %p237
      %p240 = scmp.ne.s32.totalorder %s225, %s239
      %p241 = scmp.eq.s32.totalorder %s32, 0
      %p242 = por %p240, %p241
      %s244 = sadd.s32 %s243, 1
      %p247 = scmp.eq.s32.totalorder %s26, 1
      %p248 = scmp.ne.s32.totalorder %s243, %s245
      %p249 = scmp.eq.s32.totalorder %s26, 0
      %p250 = por %p248, %p249
      %p251 = scmp.ne.s32.totalorder %s243, %s245
      %p252 = scmp.eq.s32.totalorder %s31, 1
      %p253 = por %p251, %p252
      %p254 = scmp.ne.s32.totalorder %s245, %s246
      %p255 = scmp.eq.s32.totalorder %s31, 0
      %p256 = por %p254, %p255
      %p257 = scmp.ne.s32.totalorder %s245, %s246
      %p258 = scmp.eq.s32.totalorder %s32, 1
      %p259 = por %p257, %p258
      %p261 = scmp.ne.s32.totalorder %s246, %s260
      %p262 = scmp.eq.s32.totalorder %s32, 0
      %p263 = por %p261, %p262
      %s264 = ssub.s32 %s26, %s33
      %p265 = scmp.eq.s32.totalorder %s264, 0
      %s267 = sadd.s32 %s266, 1
      %s268 = scalar_select %p265, %s266, %s267
      %p271 = pneg %p265
      %p272 = scmp.eq.s32.totalorder %s26, 1
      %p273 = por %p271, %p272
      %p274 = scmp.ne.s32.totalorder %s266, %s269
      %p275 = scmp.eq.s32.totalorder %s26, 0
      %p276 = por %p274, %p275
      %p277 = scmp.ne.s32.totalorder %s266, %s269
      %p278 = scmp.eq.s32.totalorder %s31, 1
      %p279 = por %p277, %p278
      %p280 = scmp.ne.s32.totalorder %s269, %s270
      %p281 = scmp.eq.s32.totalorder %s31, 0
      %p282 = por %p280, %p281
      %p283 = scmp.ne.s32.totalorder %s269, %s270
      %p284 = scmp.eq.s32.totalorder %s32, 1
      %p285 = por %p283, %p284
      %p287 = scmp.ne.s32.totalorder %s270, %s286
      %p288 = scmp.eq.s32.totalorder %s32, 0
      %p289 = por %p287, %p288
      %p290 = scmp.le.s32.totalorder 1, %s26
      %p291 = scmp.lt.s32.totalorder %s26, 3
      %p292 = pnand %p290, %p291
      %p293 = pneg %p292
      // Predicated region
      $region9: #{tpu_custom_call.1} parent=5 // pred_check
        _
      $region10: #{tpu_custom_call.1} parent=5 // pred_check_branch
        %295 = sbr.rel (%p292) target = $region12
      $region11: #{tpu_custom_call.1} parent=5 // pred_region
        %s296 = ssub.s32 %s26, 1
        // Predicated region
        $region13: #{tpu_custom_call.1} parent=11 // pred_check
          %p297 = pneg %p151
        $region14: #{tpu_custom_call.1} parent=11 // pred_check_branch
          %299 = sbr.rel (%p297) target = $region16
        $region15: #{tpu_custom_call.1} parent=11 // pred_region
          %s301 = ssub.s32 256, 256
          %302 = vsyncadd [#allocation9], %s301
          %s303 = sshll.u32 [#allocation8], 4
          %s304 = int_to_ptr.vmem [resolvable:$true] %s303
          %309 = dma.hbm_to_vmem [thread:$0]  %s4, 256, %s304, [#allocation9], 64, 64, 4
        $region16: #{tpu_custom_call.1} parent=11 // pred_fallthru
          _
        // Predicated region
        $region17: #{tpu_custom_call.1} parent=11 // pred_check
          %p310 = pneg %p172
        $region18: #{tpu_custom_call.1} parent=11 // pred_check_branch
          %312 = sbr.rel (%p310) target = $region20
        $region19: #{tpu_custom_call.1} parent=11 // pred_region
          _
        $region20: #{tpu_custom_call.1} parent=11 // pred_fallthru
          _
        // Predicated region
        $region21: #{tpu_custom_call.1} parent=11 // pred_check
          %p313 = pneg %p193
        $region22: #{tpu_custom_call.1} parent=11 // pred_check_branch
          %315 = sbr.rel (%p313) target = $region24
        $region23: #{tpu_custom_call.1} parent=11 // pred_region
          _
        $region24: #{tpu_custom_call.1} parent=11 // pred_fallthru
          _
        // Predicated region
        $region25: #{tpu_custom_call.1} parent=11 // pred_check
          %p316 = pneg %p214
        $region26: #{tpu_custom_call.1} parent=11 // pred_check_branch
          %318 = sbr.rel (%p316) target = $region28
        $region27: #{tpu_custom_call.1} parent=11 // pred_region
          _
        $region28: #{tpu_custom_call.1} parent=11 // pred_fallthru
          _
        // Predicated region
        $region29: #{tpu_custom_call.1} parent=11 // pred_check
          %p319 = pneg %p235
        $region30: #{tpu_custom_call.1} parent=11 // pred_check_branch
          %321 = sbr.rel (%p319) target = $region32
        $region31: #{tpu_custom_call.1} parent=11 // pred_region
          %s323 = ssub.s32 256, 256
          %324 = vsyncadd [#allocation9], %s323
          %s325 = sshll.u32 [#allocation10], 4
          %s326 = int_to_ptr.vmem [resolvable:$true] %s325
          %331 = dma.hbm_to_vmem [thread:$0]  %s8, 256, %s326, [#allocation9], 64, 64, 4
        $region32: #{tpu_custom_call.1} parent=11 // pred_fallthru
          _
        // Predicated region
        $region33: #{tpu_custom_call.1} parent=11 // pred_check
          %p332 = pneg %p256
        $region34: #{tpu_custom_call.1} parent=11 // pred_check_branch
          %334 = sbr.rel (%p332) target = $region36
        $region35: #{tpu_custom_call.1} parent=11 // pred_region
          _
        $region36: #{tpu_custom_call.1} parent=11 // pred_fallthru
          _
      $region12: #{tpu_custom_call.1} parent=5 // pred_fallthru
        _
      %p335 = scmp.lt.s32.totalorder %s26, 2
      // Predicated region
      $region37: #{tpu_custom_call.1} parent=5 // pred_check
        %p336 = pneg %p335
      $region38: #{tpu_custom_call.1} parent=5 // pred_check_branch
        %338 = sbr.rel (%p336) target = $region40
      $region39: #{tpu_custom_call.1} parent=5 // pred_region
        // Predicated region
        $region41: #{tpu_custom_call.1} parent=39 // pred_check
          %p339 = pneg %p46
        $region42: #{tpu_custom_call.1} parent=39 // pred_check_branch
          %341 = sbr.rel (%p339) target = $region44
        $region43: #{tpu_custom_call.1} parent=39 // pred_region
          %s342 = sand.u32 %s36, 1
          %s343 = scalar_lea.sflag [#allocation3], %s342
          %s344 = sand.u32 %s36, 1
          %s345 = smul.addr %s344, 4
          %s346 = scalar_lea.vmem [#allocation2], %s345
          %s348 = ssub.s32 64, 64
          %349 = vsyncadd %s343, %s348
          %s350 = smul.addr %s26, 64
          %s351 = scalar_lea.hbm %s0, %s350
          %s353 = sshll.u32 %s346, 4
          %s354 = int_to_ptr.vmem [resolvable:$true] %s353
          %356 = dma.hbm_to_vmem [thread:$0]  %s351, 64, %s354, %s343
        $region44: #{tpu_custom_call.1} parent=39 // pred_fallthru
          _
        // Predicated region
        $region45: #{tpu_custom_call.1} parent=39 // pred_check
          %p357 = pneg %p72
        $region46: #{tpu_custom_call.1} parent=39 // pred_check_branch
          %359 = sbr.rel (%p357) target = $region48
        $region47: #{tpu_custom_call.1} parent=39 // pred_region
          %s360 = sand.u32 %s26, 1
          %s361 = scalar_lea.sflag [#allocation6], %s360
          %s362 = sand.u32 %s62, 1
          %s363 = smul.addr %s362, 4
          %s364 = scalar_lea.vmem [#allocation5], %s363
          %s366 = ssub.s32 64, 64
          %367 = vsyncadd %s361, %s366
          %s368 = smul.addr %s26, 64
          %s369 = scalar_lea.hbm %s1, %s368
          %s371 = sshll.u32 %s364, 4
          %s372 = int_to_ptr.vmem [resolvable:$true] %s371
          %374 = dma.hbm_to_vmem [thread:$0]  %s369, 64, %s372, %s361
        $region48: #{tpu_custom_call.1} parent=39 // pred_fallthru
          _
        // Predicated region
        $region49: #{tpu_custom_call.1} parent=39 // pred_check
          %p375 = pneg %p98
        $region50: #{tpu_custom_call.1} parent=39 // pred_check_branch
          %377 = sbr.rel (%p375) target = $region52
        $region51: #{tpu_custom_call.1} parent=39 // pred_region
          %s378 = sand.u32 %s26, 1
          %s379 = scalar_lea.sflag [#allocation6], %s378
          %s380 = sand.u32 %s88, 1
          %s381 = smul.addr %s380, 4
          %s382 = scalar_lea.vmem [#allocation7], %s381
          %s384 = ssub.s32 64, 64
          %385 = vsyncadd %s379, %s384
          %s386 = smul.addr %s26, 64
          %s387 = scalar_lea.hbm %s2, %s386
          %s389 = sshll.u32 %s382, 4
          %s390 = int_to_ptr.vmem [resolvable:$true] %s389
          %392 = dma.hbm_to_vmem [thread:$0]  %s387, 64, %s390, %s379
        $region52: #{tpu_custom_call.1} parent=39 // pred_fallthru
          _
        // Predicated region
        $region53: #{tpu_custom_call.1} parent=39 // pred_check
          %p393 = pneg %p124
        $region54: #{tpu_custom_call.1} parent=39 // pred_check_branch
          %395 = sbr.rel (%p393) target = $region56
        $region55: #{tpu_custom_call.1} parent=39 // pred_region
          %p396 = scmp.lt.s32.totalorder %s26, 1
          %s397 = scalar_select %p396, %s26, 1
          %s398 = smul.addr %s397, 2
          %s399 = scalar_lea.vmem %s3, %s398
        $region56: #{tpu_custom_call.1} parent=39 // pred_fallthru
          _
      $region40: #{tpu_custom_call.1} parent=5 // pred_fallthru
        _
      %p400 = scmp.le.s32.totalorder 1, %s26
      %p401 = scmp.lt.s32.totalorder %s26, 3
      %p402 = pnand %p400, %p401
      %p403 = pneg %p402
      // Predicated region
      $region57: #{tpu_custom_call.1} parent=5 // pred_check
        _
      $region58: #{tpu_custom_call.1} parent=5 // pred_check_branch
        %405 = sbr.rel (%p402) target = $region60
      $region59: #{tpu_custom_call.1} parent=5 // pred_region
        %s406 = ssub.s32 %s26, 1
        %s407 = sand.u32 %s39, 1
        %s408 = scalar_lea.sflag [#allocation3], %s407
        %s409 = sand.u32 %s39, 1
        %s410 = smul.addr %s409, 4
        %s411 = scalar_lea.vmem [#allocation2], %s410
        // Predicated region
        $region61: #{tpu_custom_call.1} parent=59 // pred_check
          %p412 = pneg %p52
        $region62: #{tpu_custom_call.1} parent=59 // pred_check_branch
          %414 = sbr.rel (%p412) target = $region64
        $region63: #{tpu_custom_call.1} parent=59 // pred_region
          %415 = dma.done %s408, 64
        $region64: #{tpu_custom_call.1} parent=59 // pred_fallthru
          _
        %s416 = sand.u32 %s31, 1
        %s417 = scalar_lea.sflag [#allocation6], %s416
        %s418 = sand.u32 %s65, 1
        %s419 = smul.addr %s418, 4
        %s420 = scalar_lea.vmem [#allocation5], %s419
        // Predicated region
        $region65: #{tpu_custom_call.1} parent=59 // pred_check
          %p421 = pneg %p78
        $region66: #{tpu_custom_call.1} parent=59 // pred_check_branch
          %423 = sbr.rel (%p421) target = $region68
        $region67: #{tpu_custom_call.1} parent=59 // pred_region
          %424 = dma.done %s417, 64
        $region68: #{tpu_custom_call.1} parent=59 // pred_fallthru
          _
        %s425 = sand.u32 %s31, 1
        %s426 = scalar_lea.sflag [#allocation6], %s425
        %s427 = sand.u32 %s91, 1
        %s428 = smul.addr %s427, 4
        %s429 = scalar_lea.vmem [#allocation7], %s428
        // Predicated region
        $region69: #{tpu_custom_call.1} parent=59 // pred_check
          %p430 = pneg %p104
        $region70: #{tpu_custom_call.1} parent=59 // pred_check_branch
          %432 = sbr.rel (%p430) target = $region72
        $region71: #{tpu_custom_call.1} parent=59 // pred_region
          %433 = dma.done %s426, 64
        $region72: #{tpu_custom_call.1} parent=59 // pred_fallthru
          _
        // Predicated region
        $region73: #{tpu_custom_call.1} parent=59 // pred_check
          %p434 = pneg %p151
        $region74: #{tpu_custom_call.1} parent=59 // pred_check_branch
          %436 = sbr.rel (%p434) target = $region76
        $region75: #{tpu_custom_call.1} parent=59 // pred_region
          %437 = dma.done [#allocation9], 256
        $region76: #{tpu_custom_call.1} parent=59 // pred_fallthru
          _
        // Predicated region
        $region77: #{tpu_custom_call.1} parent=59 // pred_check
          %p438 = pneg %p235
        $region78: #{tpu_custom_call.1} parent=59 // pred_check_branch
          %440 = sbr.rel (%p438) target = $region80
        $region79: #{tpu_custom_call.1} parent=59 // pred_region
          %441 = dma.done [#allocation9], 256
        $region80: #{tpu_custom_call.1} parent=59 // pred_fallthru
          _
        %s442 = sand.u32 %s39, 1
        %s443 = scalar_lea.sflag [#allocation3], %s442
        %s444 = sand.u32 %s39, 1
        %s445 = smul.addr %s444, 4
        %s446 = scalar_lea.vmem [#allocation2], %s445
        %p447 = pneg %p52
        %p448 = pneg %p49
        %s449 = sand.u32 %s31, 1
        %s450 = scalar_lea.sflag [#allocation6], %s449
        %s451 = sand.u32 %s65, 1
        %s452 = smul.addr %s451, 4
        %s453 = scalar_lea.vmem [#allocation5], %s452
        %p454 = pneg %p78
        %p455 = pneg %p75
        %s456 = sand.u32 %s31, 1
        %s457 = scalar_lea.sflag [#allocation6], %s456
        %s458 = sand.u32 %s91, 1
        %s459 = smul.addr %s458, 4
        %s460 = scalar_lea.vmem [#allocation7], %s459
        %p461 = pneg %p104
        %p462 = pneg %p101
        %p463 = scmp.lt.s32.totalorder %s31, 1
        %s464 = scalar_select %p463, %s31, 1
        %s465 = smul.addr %s464, 2
        %s466 = scalar_lea.vmem %s3, %s465
        %p467 = pneg %p130
        %p468 = pneg %p127
        %p469 = pneg %p151
        %p470 = pneg %p148
        %p471 = pneg %p172
        %p472 = pneg %p169
        %p473 = pneg %p193
        %p474 = pneg %p190
        %p475 = pneg %p214
        %p476 = pneg %p211
        %p477 = pneg %p235
        %p478 = pneg %p232
        %p479 = pneg %p256
        %p480 = pneg %p253
        %p481 = pneg %p282
        %p482 = pneg %p279
        %s483 = sand.u32 %s269, 1
        %s484 = scalar_lea.sflag [#allocation4], %s483
        %s485 = sand.u32 %s269, 1
        %s486 = smul.addr %s485, 8
        %s487 = scalar_lea.vmem [#allocation11], %s486
        %p488 = scmp.lt.s32.totalorder %s31, 1
        %s489 = scalar_select %p488, %s31, 1
        %s490 = smul.addr %s489, 2
        %s491 = scalar_lea.vmem %s3, %s490
        %v493 = vld [vmem:[%s411] sm:$0xf]
        %v494 = vld [vmem:[%s420] sm:$0xf]
        %v495 = vld [vmem:[%s429] sm:$0xf]
        %v496 = vld [vmem:[#allocation8] sm:$0xf]
        %v497 = vld [vmem:[#allocation8 + $0x4] sm:$0xf]
        %v498 = vld [vmem:[#allocation8 + $0x8] sm:$0xf]
        %v499 = vld [vmem:[#allocation8 + $0xc] sm:$0xf]
        %v500 = vld [vmem:[%s5] sm:$0x1]
        %v502 = vlaneseq
        %v503 = vshrl.u32 %v502, 7
        %v504 = vsub.s32 0, %v503
        %v505 = vrot.slane %v500, %v504
        %v511 = vunpack.c.l.b16 %v496
        %v512 = vunpack.c.l.b16 %v497
        %v513 = vunpack.c.l.b16 %v498
        %v514 = vunpack.c.l.b16 %v499
        %v515 = vpack.c.b16 %v512, %v511
        %v516 = vpack.c.b16 %v514, %v513
        %vm519 = vcmask 261120
        %v521 = vsel %vm519, %v493, 0
        %523 = vmatprep.subr.bf16.mxu0 0
        %524 = vmatpush1.bf16.msra.mxu0 %v515
        %525 = vmatprep.subr.bf16.mxu0 0
        %526 = vmatpush1.bf16.msra.mxu0 %v516
        %527 = vmatprep.subr.bf16.mxu0 0
        %528 = vmatpush1.bf16.msra.mxu0 0
        %529 = vmatprep.subr.bf16.mxu0 0
        %530 = vmatpush1.bf16.msra.mxu0 0
        %531 = vmatprep.subr.bf16.mxu0 0
        %532 = vmatpush1.bf16.msra.mxu0 0
        %533 = vmatprep.subr.bf16.mxu0 0
        %534 = vmatpush1.bf16.msra.mxu0 0
        %535 = vmatprep.subr.bf16.mxu0 0
        %536 = vmatpush1.bf16.msra.mxu0 0
        %537 = vmatprep.subr.bf16.mxu0 0
        %538 = vmatpush1.bf16.msra.mxu0 0
        %539 = vmatprep.subr.bf16.mxu0 0
        %540 = vmatpush1.bf16.msra.mxu0 0
        %541 = vmatprep.subr.bf16.mxu0 0
        %542 = vmatpush1.bf16.msra.mxu0 0
        %543 = vmatprep.subr.bf16.mxu0 0
        %544 = vmatpush1.bf16.msra.mxu0 0
        %545 = vmatprep.subr.bf16.mxu0 0
        %546 = vmatpush1.bf16.msra.mxu0 0
        %547 = vmatprep.subr.bf16.mxu0 0
        %548 = vmatpush1.bf16.msra.mxu0 0
        %549 = vmatprep.subr.bf16.mxu0 0
        %550 = vmatpush1.bf16.msra.mxu0 0
        %551 = vmatprep.subr.bf16.mxu0 0
        %552 = vmatpush1.bf16.msra.mxu0 0
        %553 = vmatprep.subr.bf16.mxu0 0
        %554 = vmatpush1.bf16.msra.mxu0 0
        %555 = vmatprep.mubr.bf16.mxu0 0
        %556 = vmatmul.mubr.bf16.gmra.mrb[0].mxu0 %v521
        %v557 = vpop.f32.mrb[0].mxu0
        %v558 = vadd.f32 %v505, %v557
        %v559 = vpop.f32.mrb[0].mxu0
        %v560 = vpop.f32.mrb[0].mxu0
        %v561 = vpop.f32.mrb[0].mxu0
        %562 = vdwg.mxu0
        %v563 = vld [vmem:[%s6] sm:$0xf]
        %v564 = vld [vmem:[%s6 + $0x4] sm:$0xf]
        %v565 = vld [vmem:[%s6 + $0x8] sm:$0xf]
        %v566 = vld [vmem:[%s6 + $0xc] sm:$0xf]
        %v567 = vld [vmem:[%s7] sm:$0x1]
        %v569 = vlaneseq
        %v570 = vshrl.u32 %v569, 7
        %v571 = vsub.s32 0, %v570
        %v572 = vrot.slane %v567, %v571
        %v578 = vunpack.c.l.b16 %v563
        %v579 = vunpack.c.l.b16 %v564
        %v580 = vunpack.c.l.b16 %v565
        %v581 = vunpack.c.l.b16 %v566
        %v582 = vpack.c.b16 %v579, %v578
        %v583 = vpack.c.b16 %v581, %v580
        %v587 = vsel %vm519, %v494, 0
        %589 = vmatprep.subr.bf16.mxu0 0
        %590 = vmatpush1.bf16.msra.mxu0 %v582
        %591 = vmatprep.subr.bf16.mxu0 0
        %592 = vmatpush1.bf16.msra.mxu0 %v583
        %593 = vmatprep.subr.bf16.mxu0 0
        %594 = vmatpush1.bf16.msra.mxu0 0
        %595 = vmatprep.subr.bf16.mxu0 0
        %596 = vmatpush1.bf16.msra.mxu0 0
        %597 = vmatprep.subr.bf16.mxu0 0
        %598 = vmatpush1.bf16.msra.mxu0 0
        %599 = vmatprep.subr.bf16.mxu0 0
        %600 = vmatpush1.bf16.msra.mxu0 0
        %601 = vmatprep.subr.bf16.mxu0 0
        %602 = vmatpush1.bf16.msra.mxu0 0
        %603 = vmatprep.subr.bf16.mxu0 0
        %604 = vmatpush1.bf16.msra.mxu0 0
        %605 = vmatprep.subr.bf16.mxu0 0
        %606 = vmatpush1.bf16.msra.mxu0 0
        %607 = vmatprep.subr.bf16.mxu0 0
        %608 = vmatpush1.bf16.msra.mxu0 0
        %609 = vmatprep.subr.bf16.mxu0 0
        %610 = vmatpush1.bf16.msra.mxu0 0
        %611 = vmatprep.subr.bf16.mxu0 0
        %612 = vmatpush1.bf16.msra.mxu0 0
        %613 = vmatprep.subr.bf16.mxu0 0
        %614 = vmatpush1.bf16.msra.mxu0 0
        %615 = vmatprep.subr.bf16.mxu0 0
        %616 = vmatpush1.bf16.msra.mxu0 0
        %617 = vmatprep.subr.bf16.mxu0 0
        %618 = vmatpush1.bf16.msra.mxu0 0
        %619 = vmatprep.subr.bf16.mxu0 0
        %620 = vmatpush1.bf16.msra.mxu0 0
        %621 = vmatprep.mubr.bf16.mxu0 0
        %622 = vmatmul.mubr.bf16.gmra.mrb[0].mxu0 %v587
        %v623 = vpop.f32.mrb[0].mxu0
        %v624 = vadd.f32 %v572, %v623
        %v625 = vpop.f32.mrb[0].mxu0
        %v626 = vpop.f32.mrb[0].mxu0
        %v627 = vpop.f32.mrb[0].mxu0
        %628 = vdwg.mxu0
        %v629 = vld [vmem:[#allocation10] sm:$0xf]
        %v630 = vld [vmem:[#allocation10 + $0x4] sm:$0xf]
        %v631 = vld [vmem:[#allocation10 + $0x8] sm:$0xf]
        %v632 = vld [vmem:[#allocation10 + $0xc] sm:$0xf]
        %v633 = vld [vmem:[%s9] sm:$0x1]
        %v635 = vlaneseq
        %v636 = vshrl.u32 %v635, 7
        %v637 = vsub.s32 0, %v636
        %v638 = vrot.slane %v633, %v637
        %v644 = vunpack.c.l.b16 %v629
        %v645 = vunpack.c.l.b16 %v630
        %v646 = vunpack.c.l.b16 %v631
        %v647 = vunpack.c.l.b16 %v632
        %v648 = vpack.c.b16 %v645, %v644
        %v649 = vpack.c.b16 %v647, %v646
        %v653 = vsel %vm519, %v495, 0
        %655 = vmatprep.subr.bf16.mxu0 0
        %656 = vmatpush1.bf16.msra.mxu0 %v648
        %657 = vmatprep.subr.bf16.mxu0 0
        %658 = vmatpush1.bf16.msra.mxu0 %v649
        %659 = vmatprep.subr.bf16.mxu0 0
        %660 = vmatpush1.bf16.msra.mxu0 0
        %661 = vmatprep.subr.bf16.mxu0 0
        %662 = vmatpush1.bf16.msra.mxu0 0
        %663 = vmatprep.subr.bf16.mxu0 0
        %664 = vmatpush1.bf16.msra.mxu0 0
        %665 = vmatprep.subr.bf16.mxu0 0
        %666 = vmatpush1.bf16.msra.mxu0 0
        %667 = vmatprep.subr.bf16.mxu0 0
        %668 = vmatpush1.bf16.msra.mxu0 0
        %669 = vmatprep.subr.bf16.mxu0 0
        %670 = vmatpush1.bf16.msra.mxu0 0
        %671 = vmatprep.subr.bf16.mxu0 0
        %672 = vmatpush1.bf16.msra.mxu0 0
        %673 = vmatprep.subr.bf16.mxu0 0
        %674 = vmatpush1.bf16.msra.mxu0 0
        %675 = vmatprep.subr.bf16.mxu0 0
        %676 = vmatpush1.bf16.msra.mxu0 0
        %677 = vmatprep.subr.bf16.mxu0 0
        %678 = vmatpush1.bf16.msra.mxu0 0
        %679 = vmatprep.subr.bf16.mxu0 0
        %680 = vmatpush1.bf16.msra.mxu0 0
        %681 = vmatprep.subr.bf16.mxu0 0
        %682 = vmatpush1.bf16.msra.mxu0 0
        %683 = vmatprep.subr.bf16.mxu0 0
        %684 = vmatpush1.bf16.msra.mxu0 0
        %685 = vmatprep.subr.bf16.mxu0 0
        %686 = vmatpush1.bf16.msra.mxu0 0
        %687 = vmatprep.mubr.bf16.mxu0 0
        %688 = vmatmul.mubr.bf16.gmra.mrb[0].mxu0 %v653
        %v689 = vpop.f32.mrb[0].mxu0
        %v690 = vadd.f32 %v638, %v689
        %v691 = vpop.f32.mrb[0].mxu0
        %v692 = vpop.f32.mrb[0].mxu0
        %v693 = vpop.f32.mrb[0].mxu0
        %694 = vdwg.mxu0
        %v695 = vpack.c.bf16 %v558, %v558
        %v696 = vpack.c.bf16 %v624, %v624
        %v697 = vpack.c.bf16 %v690, %v690
        %v699 = vsel %vm519, %v695, 0
        %v702 = vsel %vm519, %v696, 0
        %704 = vmatprep.subr.bf16.mxu0 0
        %705 = vmatpush1.bf16.xpose.msra.mxu0 %v702
        %706 = vmatprep.subr.bf16.mxu0 0
        %707 = vmatpush1.bf16.xpose.msra.mxu0 0
        %708 = vmatprep.subr.bf16.mxu0 0
        %709 = vmatpush1.bf16.xpose.msra.mxu0 0
        %710 = vmatprep.subr.bf16.mxu0 0
        %711 = vmatpush1.bf16.xpose.msra.mxu0 0
        %712 = vmatprep.subr.bf16.mxu0 0
        %713 = vmatpush1.bf16.xpose.msra.mxu0 0
        %714 = vmatprep.subr.bf16.mxu0 0
        %715 = vmatpush1.bf16.xpose.msra.mxu0 0
        %716 = vmatprep.subr.bf16.mxu0 0
        %717 = vmatpush1.bf16.xpose.msra.mxu0 0
        %718 = vmatprep.subr.bf16.mxu0 0
        %719 = vmatpush1.bf16.xpose.msra.mxu0 0
        %720 = vmatprep.subr.bf16.mxu0 0
        %721 = vmatpush1.bf16.xpose.msra.mxu0 0
        %722 = vmatprep.subr.bf16.mxu0 0
        %723 = vmatpush1.bf16.xpose.msra.mxu0 0
        %724 = vmatprep.subr.bf16.mxu0 0
        %725 = vmatpush1.bf16.xpose.msra.mxu0 0
        %726 = vmatprep.subr.bf16.mxu0 0
        %727 = vmatpush1.bf16.xpose.msra.mxu0 0
        %728 = vmatprep.subr.bf16.mxu0 0
        %729 = vmatpush1.bf16.xpose.msra.mxu0 0
        %730 = vmatprep.subr.bf16.mxu0 0
        %731 = vmatpush1.bf16.xpose.msra.mxu0 0
        %732 = vmatprep.subr.bf16.mxu0 0
        %733 = vmatpush1.bf16.xpose.msra.mxu0 0
        %734 = vmatprep.subr.bf16.mxu0 0
        %735 = vmatpush1.bf16.xpose.msra.mxu0 0
        %736 = vmatprep.mubr.bf16.mxu0 0
        %737 = vmatmul.mubr.bf16.gmra.mrb[0].mxu0 %v699
        %v738 = vpop.f32.mrb[0].mxu0
        %v739 = vadd.f32 0.0, %v738
        %v740 = vpop.f32.mrb[0].mxu0
        %v741 = vpop.f32.mrb[0].mxu0
        %v742 = vpop.f32.mrb[0].mxu0
        %743 = vdwg.mxu0
        %v744 = vld [vmem:[%s491] sm:$0x3]
        %v745 = vunpack.c.0.s8 %v744
        %v746 = vcvt.s32.f32 %v745
        %vm747 = vcmp.ne.f32.partialorder %v746, 0.0
        %v748 = vsel %vm747, %v739, -1e+30
        %vm749 = vcmask 64512
        %v750 = vsel %vm749, %v748, -inf
        %751 = vmax.xlane.f32.xlu0 %v750
        %v752 = vpop.xlane.xlu0 %751
        %v753 = vsub.f32 %v748, %v752
        %v754 = vmul.f32 %v753, 1.442695
        %v755 = vpow.pop %v754
        %v756 = vsel %vm749, %v755, 0.0
        %757 = vadd.xlane.f32.xlu0 %v756
        %v758 = vpop.xlane.xlu0 %757
        %v759 = vrcp.pop %v758
        %v760 = vmul.f32 %v755, %v759
        %v761 = vpack.c.bf16 %v760, %v760
        %v763 = vsel %vm749, %v761, 0
        %vm765 = vcmask 1043456
        %v767 = vsel %vm765, %v697, 0
        %769 = vmatprep.subr.bf16.mxu0 0
        %770 = vmatpush1.bf16.msra.mxu0 %v767
        %771 = vmatprep.subr.bf16.mxu0 0
        %772 = vmatpush1.bf16.msra.mxu0 0
        %773 = vmatprep.subr.bf16.mxu0 0
        %774 = vmatpush1.bf16.msra.mxu0 0
        %775 = vmatprep.subr.bf16.mxu0 0
        %776 = vmatpush1.bf16.msra.mxu0 0
        %777 = vmatprep.subr.bf16.mxu0 0
        %778 = vmatpush1.bf16.msra.mxu0 0
        %779 = vmatprep.subr.bf16.mxu0 0
        %780 = vmatpush1.bf16.msra.mxu0 0
        %781 = vmatprep.subr.bf16.mxu0 0
        %782 = vmatpush1.bf16.msra.mxu0 0
        %783 = vmatprep.subr.bf16.mxu0 0
        %784 = vmatpush1.bf16.msra.mxu0 0
        %785 = vmatprep.subr.bf16.mxu0 0
        %786 = vmatpush1.bf16.msra.mxu0 0
        %787 = vmatprep.subr.bf16.mxu0 0
        %788 = vmatpush1.bf16.msra.mxu0 0
        %789 = vmatprep.subr.bf16.mxu0 0
        %790 = vmatpush1.bf16.msra.mxu0 0
        %791 = vmatprep.subr.bf16.mxu0 0
        %792 = vmatpush1.bf16.msra.mxu0 0
        %793 = vmatprep.subr.bf16.mxu0 0
        %794 = vmatpush1.bf16.msra.mxu0 0
        %795 = vmatprep.subr.bf16.mxu0 0
        %796 = vmatpush1.bf16.msra.mxu0 0
        %797 = vmatprep.subr.bf16.mxu0 0
        %798 = vmatpush1.bf16.msra.mxu0 0
        %799 = vmatprep.subr.bf16.mxu0 0
        %800 = vmatpush1.bf16.msra.mxu0 0
        %801 = vmatprep.mubr.bf16.mxu0 0
        %802 = vmatmul.mubr.bf16.gmra.mrb[0].mxu0 %v763
        %v803 = vpop.f32.mrb[0].mxu0
        %v804 = vadd.f32 0.0, %v803
        %v805 = vpop.f32.mrb[0].mxu0
        %v806 = vpop.f32.mrb[0].mxu0
        %v807 = vpop.f32.mrb[0].mxu0
        %808 = vdwg.mxu0
        %809 = vst.msk [vmem:[%s487] sm:$0xff] %vm519, %v804
        %s810 = sand.u32 %s269, 1
        %s811 = scalar_lea.sflag [#allocation4], %s810
        %s812 = sand.u32 %s269, 1
        %s813 = smul.addr %s812, 8
        %s814 = scalar_lea.vmem [#allocation11], %s813
        // Predicated region
        $region81: #{tpu_custom_call.1} parent=59 // pred_check
          %p815 = pneg %p279
        $region82: #{tpu_custom_call.1} parent=59 // pred_check_branch
          %817 = sbr.rel (%p815) target = $region84
        $region83: #{tpu_custom_call.1} parent=59 // pred_region
          %s819 = ssub.s32 128, 128
          %820 = vsyncadd %s811, %s819
          %s821 = smul.addr %s31, 128
          %s822 = scalar_lea.hbm %s10, %s821
          %s824 = sshll.u32 %s814, 4
          %s825 = int_to_ptr.vmem [resolvable:$true] %s824
          %827 = dma.vmem_to_hbm [thread:$0]  %s825, 128, %s822, %s811
        $region84: #{tpu_custom_call.1} parent=59 // pred_fallthru
          _
      $region60: #{tpu_custom_call.1} parent=5 // pred_fallthru
        _
      %p828 = scmp.le.s32.totalorder 2, %s26
      // Predicated region
      $region85: #{tpu_custom_call.1} parent=5 // pred_check
        %p829 = pneg %p828
      $region86: #{tpu_custom_call.1} parent=5 // pred_check_branch
        %831 = sbr.rel (%p829) target = $region88
      $region87: #{tpu_custom_call.1} parent=5 // pred_region
        %s832 = ssub.s32 %s26, 2
        // Predicated region
        $region89: #{tpu_custom_call.1} parent=87 // pred_check
          %p833 = pneg %p285
        $region90: #{tpu_custom_call.1} parent=87 // pred_check_branch
          %835 = sbr.rel (%p833) target = $region92
        $region91: #{tpu_custom_call.1} parent=87 // pred_region
          %s836 = sand.u32 %s270, 1
          %s837 = scalar_lea.sflag [#allocation4], %s836
          %s838 = sand.u32 %s270, 1
          %s839 = smul.addr %s838, 8
          %s840 = scalar_lea.vmem [#allocation11], %s839
          %841 = dma.done %s837, 128
        $region92: #{tpu_custom_call.1} parent=87 // pred_fallthru
          _
      $region88: #{tpu_custom_call.1} parent=5 // pred_fallthru
        _
    $region6: #{tpu_custom_call.1} parent=1 // loop_footer
      %s30 = sadd.s32 1, %s26
    $region7: #{tpu_custom_call.1} parent=1 // loop_footer_branch
      %25 = sbr.rel target = $region3
    $region8: #{tpu_custom_call.1} parent=1 // loop_exit
      _
    %842 = vsyncpa [#allocation3], 1
    %s843 = scalar_lea.sflag [#allocation3], 1
    %844 = vsyncpa %s843, 1
    %845 = vsyncpa [#allocation6], 1
    %s846 = scalar_lea.sflag [#allocation6], 1
    %847 = vsyncpa %s846, 1
    %848 = vsyncpa [#allocation9], 1
    %849 = vsyncpa [#allocation4], 1
    %s850 = scalar_lea.sflag [#allocation4], 1
    %851 = vsyncpa %s850, 1

</llo_original>
